<compile_context>
chip_gen: v6e
topology: v6e:2x2x1
jax: 0.10.0
libtpu: 0.0.40
codegen_flags: <defaults>
</compile_context>

<pallas_src>
import functools

import jax
import jax.numpy as jnp
from jax.experimental import pallas as pl
from jax.experimental.pallas import tpu as pltpu


# ----------------------- fused LanguageModel kernel -------------------------
def _fused_lm_kernel(ids_ref,                      # SMEM (T*B,) int32  (scalar prefetch)
                     table_ref,                    # (V, H)
                     wih_ref, whh_ref, b_ref,      # (H, 4H), (H, 4H), (1, 4H)
                     gamma_ref, beta_ref,          # (1, H), (1, H)
                     wout_ref, bout_ref,           # (H, V), (1, V)
                     out_ref,                      # (T*B, V)
                     emb_scr, lo_scr,              # VMEM (T*B, H) x2
                     *, seq_len, batch, hidden, eps):
    tb = seq_len * batch

    # 1) embedding gather: ids are SMEM scalars, table rows are dynamic VMEM row loads.
    for n in range(tb):
        idx = ids_ref[n]
        emb_scr[pl.ds(n, 1), :] = table_ref[pl.ds(idx, 1), :]
    emb = emb_scr[...]                                        # (T*B, H)

    # 2) hoisted input projection: one large matmul instead of T tiny ones.
    gates_x = (jnp.dot(emb, wih_ref[...], preferred_element_type=jnp.float32)
               + b_ref[...])                                  # (T*B, 4H), gate order [i,f,g,o]

    # 3) LSTM recurrence, fully unrolled (only the h-side matmul is on the serial path).
    whh = whh_ref[...]
    h = jnp.zeros((batch, hidden), jnp.float32)
    c = jnp.zeros((batch, hidden), jnp.float32)
    for t in range(seq_len):
        g = (gates_x[t * batch:(t + 1) * batch, :]
             + jnp.dot(h, whh, preferred_element_type=jnp.float32))   # (B, 4H)
        i = jax.nn.sigmoid(g[:, 0 * hidden:1 * hidden])
        f = jax.nn.sigmoid(g[:, 1 * hidden:2 * hidden])
        gg = jnp.tanh(g[:, 2 * hidden:3 * hidden])
        o = jax.nn.sigmoid(g[:, 3 * hidden:4 * hidden])
        c = f * c + i * gg
        h = o * jnp.tanh(c)
        lo_scr[pl.ds(t * batch, batch), :] = h

    # 4) BatchNorm1d (training-mode batch stats over the (T,B) axes, biased variance)
    #    + Dropout(p=0) == identity + output Linear, all fused (no HBM round trip).
    lo = lo_scr[...]                                          # (T*B, H)
    mean = jnp.mean(lo, axis=0, keepdims=True)
    var = jnp.mean(jnp.square(lo - mean), axis=0, keepdims=True)
    y = (lo - mean) * jax.lax.rsqrt(var + eps) * gamma_ref[...] + beta_ref[...]
    out_ref[...] = (jnp.dot(y, wout_ref[...], preferred_element_type=jnp.float32)
                    + bout_ref[...])                          # (T*B, V), lane-dense


# ------------------------------- wrapper ------------------------------------
def language_model_forward(x_ids, params, eps=1e-5):
    T, B = x_ids.shape
    table = params["embedding"]
    V, H = table.shape
    TB = T * B

    kernel = functools.partial(_fused_lm_kernel,
                               seq_len=T, batch=B, hidden=H, eps=eps)

    logits_flat = pl.pallas_call(
        kernel,
        out_shape=jax.ShapeDtypeStruct((TB, V), jnp.float32),
        grid_spec=pltpu.PrefetchScalarGridSpec(
            num_scalar_prefetch=1,            # token ids -> SMEM
            grid=(1,),                        # whole model in a single grid step
            in_specs=[
                pl.BlockSpec((V, H), lambda i, ids: (0, 0)),          # embedding table
                pl.BlockSpec((H, 4 * H), lambda i, ids: (0, 0)),      # W_ih^T
                pl.BlockSpec((H, 4 * H), lambda i, ids: (0, 0)),      # W_hh^T
                pl.BlockSpec((1, 4 * H), lambda i, ids: (0, 0)),      # b_ih + b_hh
                pl.BlockSpec((1, H), lambda i, ids: (0, 0)),          # bn gamma
                pl.BlockSpec((1, H), lambda i, ids: (0, 0)),          # bn beta
                pl.BlockSpec((H, V), lambda i, ids: (0, 0)),          # W_out^T
                pl.BlockSpec((1, V), lambda i, ids: (0, 0)),          # b_out
            ],
            out_specs=pl.BlockSpec((TB, V), lambda i, ids: (0, 0)),
            scratch_shapes=[
                pltpu.VMEM((TB, H), jnp.float32),   # gathered embeddings
                pltpu.VMEM((TB, H), jnp.float32),   # lstm outputs (stay in VMEM)
            ],
        ),
        compiler_params=pltpu.CompilerParams(dimension_semantics=("arbitrary",)),
    )(x_ids.reshape(TB), table, params["w_ih_t"], params["w_hh_t"],
      params["lstm_bias"], params["bn_gamma"], params["bn_beta"],
      params["w_out_t"], params["b_out"])

    return logits_flat.reshape(T, B, V)


# --------------------------- pure-JAX reference ------------------------------
def reference_forward(x_ids, params, eps=1e-5):
    emb = params["embedding"][x_ids]
    T, B, H = emb.shape
    h = jnp.zeros((B, H), jnp.float32)
    c = jnp.zeros((B, H), jnp.float32)
    outs = []
    for t in range(T):
        gates = emb[t] @ params["w_ih_t"] + h @ params["w_hh_t"] + params["lstm_bias"][0]
        i = jax.nn.sigmoid(gates[:, :H])
        f = jax.nn.sigmoid(gates[:, H:2 * H])
        g = jnp.tanh(gates[:, 2 * H:3 * H])
        o = jax.nn.sigmoid(gates[:, 3 * H:])
        c = f * c + i * g
        h = o * jnp.tanh(c)
        outs.append(h)
    lo = jnp.stack(outs, axis=0).reshape(T * B, H)
    mean = lo.mean(axis=0, keepdims=True)
    var = jnp.mean((lo - mean) ** 2, axis=0, keepdims=True)
    y = (lo - mean) * jax.lax.rsqrt(var + eps) * params["bn_gamma"] + params["bn_beta"]
    logits = y @ params["w_out_t"] + params["b_out"]
    return logits.reshape(T, B, -1)


if __name__ == "__main__":
    VOCAB, HIDDEN, SEQ, BATCH = 128, 32, 8, 2

    key = jax.random.PRNGKey(0)
    ks = jax.random.split(key, 8)
    bound = float(1.0 / jnp.sqrt(HIDDEN))

    params = {
        # nn.Embedding(vocab, rnn_size): N(0, 1)
        "embedding": jax.random.normal(ks[0], (VOCAB, HIDDEN), jnp.float32),
        # nn.LSTM weights stored pre-transposed: (H, 4H), gate order [i, f, g, o]
        "w_ih_t": jax.random.uniform(ks[1], (HIDDEN, 4 * HIDDEN), jnp.float32, -bound, bound),
        "w_hh_t": jax.random.uniform(ks[2], (HIDDEN, 4 * HIDDEN), jnp.float32, -bound, bound),
        # b_ih + b_hh folded together
        "lstm_bias": jax.random.uniform(ks[3], (1, 4 * HIDDEN), jnp.float32, -bound, bound),
        # BatchNorm1d(rnn_size) fresh init
        "bn_gamma": jnp.ones((1, HIDDEN), jnp.float32),
        "bn_beta": jnp.zeros((1, HIDDEN), jnp.float32),
        # nn.Linear(rnn_size, vocab) stored pre-transposed: (H, V)
        "w_out_t": jax.random.uniform(ks[4], (HIDDEN, VOCAB), jnp.float32, -bound, bound),
        "b_out": jax.random.uniform(ks[5], (1, VOCAB), jnp.float32, -bound, bound),
    }

    x_ids = jax.random.randint(ks[6], (SEQ, BATCH), 0, VOCAB, dtype=jnp.int32)

    logits = language_model_forward(x_ids, params)
    jax.block_until_ready(logits)

    ref = reference_forward(x_ids, params)
    assert logits.shape == (SEQ, BATCH, VOCAB), logits.shape
    assert jnp.allclose(logits, ref, atol=1e-4, rtol=1e-4), \
        float(jnp.max(jnp.abs(logits - ref)))

    print("KERNEL_OK")
</pallas_src>

<mosaic_0001>
module attributes {stable_mosaic.version = 11 : i64} {
  func.func @_fused_lm_kernel(%arg0: i32, %arg1: memref<16xi32, #tpu.memory_space<smem>>, %arg2: memref<128x32xf32, #tpu.memory_space<vmem>>, %arg3: memref<32x128xf32, #tpu.memory_space<vmem>>, %arg4: memref<32x128xf32, #tpu.memory_space<vmem>>, %arg5: memref<1x128xf32, #tpu.memory_space<vmem>>, %arg6: memref<1x32xf32, #tpu.memory_space<vmem>>, %arg7: memref<1x32xf32, #tpu.memory_space<vmem>>, %arg8: memref<32x128xf32, #tpu.memory_space<vmem>>, %arg9: memref<1x128xf32, #tpu.memory_space<vmem>>, %arg10: memref<16x128xf32, #tpu.memory_space<vmem>>, %arg11: memref<16x32xf32, #tpu.memory_space<vmem>>, %arg12: memref<16x32xf32, #tpu.memory_space<vmem>>) attributes {dimension_semantics = [#tpu.dimension_semantics<arbitrary>], iteration_bounds = array<i64: 1>, scalar_prefetch = 1 : i64, scratch_operands = 2 : i64, tpu.core_type = #tpu.core_type<tc>, window_params = [{pipeline_mode = #tpu.pipeline_mode<synchronous>, transform_indices = @transform_0, window_bounds = array<i64: 128, 32>}, {pipeline_mode = #tpu.pipeline_mode<synchronous>, transform_indices = @transform_1, window_bounds = array<i64: 32, 128>}, {pipeline_mode = #tpu.pipeline_mode<synchronous>, transform_indices = @transform_2, window_bounds = array<i64: 32, 128>}, {pipeline_mode = #tpu.pipeline_mode<synchronous>, transform_indices = @transform_3, window_bounds = array<i64: 1, 128>}, {pipeline_mode = #tpu.pipeline_mode<synchronous>, transform_indices = @transform_4, window_bounds = array<i64: 1, 32>}, {pipeline_mode = #tpu.pipeline_mode<synchronous>, transform_indices = @transform_5, window_bounds = array<i64: 1, 32>}, {pipeline_mode = #tpu.pipeline_mode<synchronous>, transform_indices = @transform_6, window_bounds = array<i64: 32, 128>}, {pipeline_mode = #tpu.pipeline_mode<synchronous>, transform_indices = @transform_7, window_bounds = array<i64: 1, 128>}, {pipeline_mode = #tpu.pipeline_mode<synchronous>, transform_indices = @transform_8, window_bounds = array<i64: 16, 128>}]} {
    %c0 = arith.constant 0 : index
    %0 = memref.load %arg1[%c0] : memref<16xi32, #tpu.memory_space<smem>>
    %1 = arith.index_cast %0 : i32 to index
    %c0_0 = arith.constant 0 : index
    %2 = vector.load %arg2[%1, %c0_0] : memref<128x32xf32, #tpu.memory_space<vmem>>, vector<1x32xf32>
    %c0_1 = arith.constant 0 : index
    %c0_2 = arith.constant 0 : index
    %3 = vector.load %arg11[%c0_1, %c0_2] : memref<16x32xf32, #tpu.memory_space<vmem>>, vector<1x32xf32>
    tpu.vector_store %arg11[%c0_1, %c0_2], %2 {strides = array<i32>} : memref<16x32xf32, #tpu.memory_space<vmem>>, vector<1x32xf32>,
    %c1 = arith.constant 1 : index
    %4 = memref.load %arg1[%c1] : memref<16xi32, #tpu.memory_space<smem>>
    %5 = arith.index_cast %4 : i32 to index
    %c0_3 = arith.constant 0 : index
    %6 = vector.load %arg2[%5, %c0_3] : memref<128x32xf32, #tpu.memory_space<vmem>>, vector<1x32xf32>
    %c1_4 = arith.constant 1 : index
    %c0_5 = arith.constant 0 : index
    %7 = vector.load %arg11[%c1_4, %c0_5] : memref<16x32xf32, #tpu.memory_space<vmem>>, vector<1x32xf32>
    tpu.vector_store %arg11[%c1_4, %c0_5], %6 {strides = array<i32>} : memref<16x32xf32, #tpu.memory_space<vmem>>, vector<1x32xf32>,
    %c2 = arith.constant 2 : index
    %8 = memref.load %arg1[%c2] : memref<16xi32, #tpu.memory_space<smem>>
    %9 = arith.index_cast %8 : i32 to index
    %c0_6 = arith.constant 0 : index
    %10 = vector.load %arg2[%9, %c0_6] : memref<128x32xf32, #tpu.memory_space<vmem>>, vector<1x32xf32>
    %c2_7 = arith.constant 2 : index
    %c0_8 = arith.constant 0 : index
    %11 = vector.load %arg11[%c2_7, %c0_8] : memref<16x32xf32, #tpu.memory_space<vmem>>, vector<1x32xf32>
    tpu.vector_store %arg11[%c2_7, %c0_8], %10 {strides = array<i32>} : memref<16x32xf32, #tpu.memory_space<vmem>>, vector<1x32xf32>,
    %c3 = arith.constant 3 : index
    %12 = memref.load %arg1[%c3] : memref<16xi32, #tpu.memory_space<smem>>
    %13 = arith.index_cast %12 : i32 to index
    %c0_9 = arith.constant 0 : index
    %14 = vector.load %arg2[%13, %c0_9] : memref<128x32xf32, #tpu.memory_space<vmem>>, vector<1x32xf32>
    %c3_10 = arith.constant 3 : index
    %c0_11 = arith.constant 0 : index
    %15 = vector.load %arg11[%c3_10, %c0_11] : memref<16x32xf32, #tpu.memory_space<vmem>>, vector<1x32xf32>
    tpu.vector_store %arg11[%c3_10, %c0_11], %14 {strides = array<i32>} : memref<16x32xf32, #tpu.memory_space<vmem>>, vector<1x32xf32>,
    %c4 = arith.constant 4 : index
    %16 = memref.load %arg1[%c4] : memref<16xi32, #tpu.memory_space<smem>>
    %17 = arith.index_cast %16 : i32 to index
    %c0_12 = arith.constant 0 : index
    %18 = vector.load %arg2[%17, %c0_12] : memref<128x32xf32, #tpu.memory_space<vmem>>, vector<1x32xf32>
    %c4_13 = arith.constant 4 : index
    %c0_14 = arith.constant 0 : index
    %19 = vector.load %arg11[%c4_13, %c0_14] : memref<16x32xf32, #tpu.memory_space<vmem>>, vector<1x32xf32>
    tpu.vector_store %arg11[%c4_13, %c0_14], %18 {strides = array<i32>} : memref<16x32xf32, #tpu.memory_space<vmem>>, vector<1x32xf32>,
    %c5 = arith.constant 5 : index
    %20 = memref.load %arg1[%c5] : memref<16xi32, #tpu.memory_space<smem>>
    %21 = arith.index_cast %20 : i32 to index
    %c0_15 = arith.constant 0 : index
    %22 = vector.load %arg2[%21, %c0_15] : memref<128x32xf32, #tpu.memory_space<vmem>>, vector<1x32xf32>
    %c5_16 = arith.constant 5 : index
    %c0_17 = arith.constant 0 : index
    %23 = vector.load %arg11[%c5_16, %c0_17] : memref<16x32xf32, #tpu.memory_space<vmem>>, vector<1x32xf32>
    tpu.vector_store %arg11[%c5_16, %c0_17], %22 {strides = array<i32>} : memref<16x32xf32, #tpu.memory_space<vmem>>, vector<1x32xf32>,
    %c6 = arith.constant 6 : index
    %24 = memref.load %arg1[%c6] : memref<16xi32, #tpu.memory_space<smem>>
    %25 = arith.index_cast %24 : i32 to index
    %c0_18 = arith.constant 0 : index
    %26 = vector.load %arg2[%25, %c0_18] : memref<128x32xf32, #tpu.memory_space<vmem>>, vector<1x32xf32>
    %c6_19 = arith.constant 6 : index
    %c0_20 = arith.constant 0 : index
    %27 = vector.load %arg11[%c6_19, %c0_20] : memref<16x32xf32, #tpu.memory_space<vmem>>, vector<1x32xf32>
    tpu.vector_store %arg11[%c6_19, %c0_20], %26 {strides = array<i32>} : memref<16x32xf32, #tpu.memory_space<vmem>>, vector<1x32xf32>,
    %c7 = arith.constant 7 : index
    %28 = memref.load %arg1[%c7] : memref<16xi32, #tpu.memory_space<smem>>
    %29 = arith.index_cast %28 : i32 to index
    %c0_21 = arith.constant 0 : index
    %30 = vector.load %arg2[%29, %c0_21] : memref<128x32xf32, #tpu.memory_space<vmem>>, vector<1x32xf32>
    %c7_22 = arith.constant 7 : index
    %c0_23 = arith.constant 0 : index
    %31 = vector.load %arg11[%c7_22, %c0_23] : memref<16x32xf32, #tpu.memory_space<vmem>>, vector<1x32xf32>
    tpu.vector_store %arg11[%c7_22, %c0_23], %30 {strides = array<i32>} : memref<16x32xf32, #tpu.memory_space<vmem>>, vector<1x32xf32>,
    %c8 = arith.constant 8 : index
    %32 = memref.load %arg1[%c8] : memref<16xi32, #tpu.memory_space<smem>>
    %33 = arith.index_cast %32 : i32 to index
    %c0_24 = arith.constant 0 : index
    %34 = vector.load %arg2[%33, %c0_24] : memref<128x32xf32, #tpu.memory_space<vmem>>, vector<1x32xf32>
    %c8_25 = arith.constant 8 : index
    %c0_26 = arith.constant 0 : index
    %35 = vector.load %arg11[%c8_25, %c0_26] : memref<16x32xf32, #tpu.memory_space<vmem>>, vector<1x32xf32>
    tpu.vector_store %arg11[%c8_25, %c0_26], %34 {strides = array<i32>} : memref<16x32xf32, #tpu.memory_space<vmem>>, vector<1x32xf32>,
    %c9 = arith.constant 9 : index
    %36 = memref.load %arg1[%c9] : memref<16xi32, #tpu.memory_space<smem>>
    %37 = arith.index_cast %36 : i32 to index
    %c0_27 = arith.constant 0 : index
    %38 = vector.load %arg2[%37, %c0_27] : memref<128x32xf32, #tpu.memory_space<vmem>>, vector<1x32xf32>
    %c9_28 = arith.constant 9 : index
    %c0_29 = arith.constant 0 : index
    %39 = vector.load %arg11[%c9_28, %c0_29] : memref<16x32xf32, #tpu.memory_space<vmem>>, vector<1x32xf32>
    tpu.vector_store %arg11[%c9_28, %c0_29], %38 {strides = array<i32>} : memref<16x32xf32, #tpu.memory_space<vmem>>, vector<1x32xf32>,
    %c10 = arith.constant 10 : index
    %40 = memref.load %arg1[%c10] : memref<16xi32, #tpu.memory_space<smem>>
    %41 = arith.index_cast %40 : i32 to index
    %c0_30 = arith.constant 0 : index
    %42 = vector.load %arg2[%41, %c0_30] : memref<128x32xf32, #tpu.memory_space<vmem>>, vector<1x32xf32>
    %c10_31 = arith.constant 10 : index
    %c0_32 = arith.constant 0 : index
    %43 = vector.load %arg11[%c10_31, %c0_32] : memref<16x32xf32, #tpu.memory_space<vmem>>, vector<1x32xf32>
    tpu.vector_store %arg11[%c10_31, %c0_32], %42 {strides = array<i32>} : memref<16x32xf32, #tpu.memory_space<vmem>>, vector<1x32xf32>,
    %c11 = arith.constant 11 : index
    %44 = memref.load %arg1[%c11] : memref<16xi32, #tpu.memory_space<smem>>
    %45 = arith.index_cast %44 : i32 to index
    %c0_33 = arith.constant 0 : index
    %46 = vector.load %arg2[%45, %c0_33] : memref<128x32xf32, #tpu.memory_space<vmem>>, vector<1x32xf32>
    %c11_34 = arith.constant 11 : index
    %c0_35 = arith.constant 0 : index
    %47 = vector.load %arg11[%c11_34, %c0_35] : memref<16x32xf32, #tpu.memory_space<vmem>>, vector<1x32xf32>
    tpu.vector_store %arg11[%c11_34, %c0_35], %46 {strides = array<i32>} : memref<16x32xf32, #tpu.memory_space<vmem>>, vector<1x32xf32>,
    %c12 = arith.constant 12 : index
    %48 = memref.load %arg1[%c12] : memref<16xi32, #tpu.memory_space<smem>>
    %49 = arith.index_cast %48 : i32 to index
    %c0_36 = arith.constant 0 : index
    %50 = vector.load %arg2[%49, %c0_36] : memref<128x32xf32, #tpu.memory_space<vmem>>, vector<1x32xf32>
    %c12_37 = arith.constant 12 : index
    %c0_38 = arith.constant 0 : index
    %51 = vector.load %arg11[%c12_37, %c0_38] : memref<16x32xf32, #tpu.memory_space<vmem>>, vector<1x32xf32>
    tpu.vector_store %arg11[%c12_37, %c0_38], %50 {strides = array<i32>} : memref<16x32xf32, #tpu.memory_space<vmem>>, vector<1x32xf32>,
    %c13 = arith.constant 13 : index
    %52 = memref.load %arg1[%c13] : memref<16xi32, #tpu.memory_space<smem>>
    %53 = arith.index_cast %52 : i32 to index
    %c0_39 = arith.constant 0 : index
    %54 = vector.load %arg2[%53, %c0_39] : memref<128x32xf32, #tpu.memory_space<vmem>>, vector<1x32xf32>
    %c13_40 = arith.constant 13 : index
    %c0_41 = arith.constant 0 : index
    %55 = vector.load %arg11[%c13_40, %c0_41] : memref<16x32xf32, #tpu.memory_space<vmem>>, vector<1x32xf32>
    tpu.vector_store %arg11[%c13_40, %c0_41], %54 {strides = array<i32>} : memref<16x32xf32, #tpu.memory_space<vmem>>, vector<1x32xf32>,
    %c14 = arith.constant 14 : index
    %56 = memref.load %arg1[%c14] : memref<16xi32, #tpu.memory_space<smem>>
    %57 = arith.index_cast %56 : i32 to index
    %c0_42 = arith.constant 0 : index
    %58 = vector.load %arg2[%57, %c0_42] : memref<128x32xf32, #tpu.memory_space<vmem>>, vector<1x32xf32>
    %c14_43 = arith.constant 14 : index
    %c0_44 = arith.constant 0 : index
    %59 = vector.load %arg11[%c14_43, %c0_44] : memref<16x32xf32, #tpu.memory_space<vmem>>, vector<1x32xf32>
    tpu.vector_store %arg11[%c14_43, %c0_44], %58 {strides = array<i32>} : memref<16x32xf32, #tpu.memory_space<vmem>>, vector<1x32xf32>,
    %c15 = arith.constant 15 : index
    %60 = memref.load %arg1[%c15] : memref<16xi32, #tpu.memory_space<smem>>
    %61 = arith.index_cast %60 : i32 to index
    %c0_45 = arith.constant 0 : index
    %62 = vector.load %arg2[%61, %c0_45] : memref<128x32xf32, #tpu.memory_space<vmem>>, vector<1x32xf32>
    %c15_46 = arith.constant 15 : index
    %c0_47 = arith.constant 0 : index
    %63 = vector.load %arg11[%c15_46, %c0_47] : memref<16x32xf32, #tpu.memory_space<vmem>>, vector<1x32xf32>
    tpu.vector_store %arg11[%c15_46, %c0_47], %62 {strides = array<i32>} : memref<16x32xf32, #tpu.memory_space<vmem>>, vector<1x32xf32>,
    %c0_48 = arith.constant 0 : index
    %c0_49 = arith.constant 0 : index
    %64 = vector.load %arg11[%c0_48, %c0_49] : memref<16x32xf32, #tpu.memory_space<vmem>>, vector<16x32xf32>
    %c0_50 = arith.constant 0 : index
    %c0_51 = arith.constant 0 : index
    %65 = vector.load %arg3[%c0_50, %c0_51] : memref<32x128xf32, #tpu.memory_space<vmem>>, vector<32x128xf32>
    %cst = arith.constant dense<0.000000e+00> : vector<16x128xf32>
    %66 = tpu.matmul %64, %65, %cst {dimension_numbers = #tpu.dot_dimension_numbers<[1], [0], [0], [1], [0, 0, 1, 1], [], []>} : vector<16x32xf32>, vector<32x128xf32>, vector<16x128xf32> -> vector<16x128xf32>
    %c0_52 = arith.constant 0 : index
    %c0_53 = arith.constant 0 : index
    %67 = vector.load %arg5[%c0_52, %c0_53] : memref<1x128xf32, #tpu.memory_space<vmem>>, vector<1x128xf32>
    %68 = vector.broadcast %67 : vector<1x128xf32> to vector<16x128xf32>
    %69 = arith.addf %66, %68 : vector<16x128xf32>
    %c0_54 = arith.constant 0 : index
    %c0_55 = arith.constant 0 : index
    %70 = vector.load %arg4[%c0_54, %c0_55] : memref<32x128xf32, #tpu.memory_space<vmem>>, vector<32x128xf32>
    %cst_56 = arith.constant 0.000000e+00 : f32
    %71 = vector.broadcast %cst_56 : f32 to vector<2x32xf32>
    %cst_57 = arith.constant 0.000000e+00 : f32
    %72 = vector.broadcast %cst_57 : f32 to vector<2x32xf32>
    %73 = vector.extract_strided_slice %69 {offsets = [0, 0], sizes = [2, 128], strides = [1, 1]} : vector<16x128xf32> to vector<2x128xf32>
    %cst_58 = arith.constant dense<0.000000e+00> : vector<2x128xf32>
    %74 = tpu.matmul %71, %70, %cst_58 {dimension_numbers = #tpu.dot_dimension_numbers<[1], [0], [0], [1], [0, 0, 1, 1], [], []>} : vector<2x32xf32>, vector<32x128xf32>, vector<2x128xf32> -> vector<2x128xf32>
    %75 = arith.addf %73, %74 : vector<2x128xf32>
    %76 = vector.extract_strided_slice %75 {offsets = [0, 0], sizes = [2, 32], strides = [1, 1]} : vector<2x128xf32> to vector<2x32xf32>
    %77 = arith.negf %76 : vector<2x32xf32>
    %78 = math.exp %77 : vector<2x32xf32>
    %cst_59 = arith.constant 1.000000e+00 : f32
    %79 = vector.broadcast %cst_59 : f32 to vector<2x32xf32>
    %80 = arith.addf %79, %78 : vector<2x32xf32>
    %81 = arith.divf %79, %80 : vector<2x32xf32>
    %82 = vector.extract_strided_slice %75 {offsets = [0, 32], sizes = [2, 32], strides = [1, 1]} : vector<2x128xf32> to vector<2x32xf32>
    %83 = arith.negf %82 : vector<2x32xf32>
    %84 = math.exp %83 : vector<2x32xf32>
    %cst_60 = arith.constant 1.000000e+00 : f32
    %85 = vector.broadcast %cst_60 : f32 to vector<2x32xf32>
    %86 = arith.addf %85, %84 : vector<2x32xf32>
    %87 = arith.divf %85, %86 : vector<2x32xf32>
    %88 = vector.extract_strided_slice %75 {offsets = [0, 64], sizes = [2, 32], strides = [1, 1]} : vector<2x128xf32> to vector<2x32xf32>
    %89 = math.tanh %88 : vector<2x32xf32>
    %90 = vector.extract_strided_slice %75 {offsets = [0, 96], sizes = [2, 32], strides = [1, 1]} : vector<2x128xf32> to vector<2x32xf32>
    %91 = arith.negf %90 : vector<2x32xf32>
    %92 = math.exp %91 : vector<2x32xf32>
    %cst_61 = arith.constant 1.000000e+00 : f32
    %93 = vector.broadcast %cst_61 : f32 to vector<2x32xf32>
    %94 = arith.addf %93, %92 : vector<2x32xf32>
    %95 = arith.divf %93, %94 : vector<2x32xf32>
    %96 = arith.mulf %87, %72 : vector<2x32xf32>
    %97 = arith.mulf %81, %89 : vector<2x32xf32>
    %98 = arith.addf %96, %97 : vector<2x32xf32>
    %99 = math.tanh %98 : vector<2x32xf32>
    %100 = arith.mulf %95, %99 : vector<2x32xf32>
    %c0_62 = arith.constant 0 : index
    %c0_63 = arith.constant 0 : index
    %101 = vector.load %arg12[%c0_62, %c0_63] : memref<16x32xf32, #tpu.memory_space<vmem>>, vector<2x32xf32>
    tpu.vector_store %arg12[%c0_62, %c0_63], %100 {strides = array<i32>} : memref<16x32xf32, #tpu.memory_space<vmem>>, vector<2x32xf32>,
    %102 = vector.extract_strided_slice %69 {offsets = [2, 0], sizes = [2, 128], strides = [1, 1]} : vector<16x128xf32> to vector<2x128xf32>
    %cst_64 = arith.constant dense<0.000000e+00> : vector<2x128xf32>
    %103 = tpu.matmul %100, %70, %cst_64 {dimension_numbers = #tpu.dot_dimension_numbers<[1], [0], [0], [1], [0, 0, 1, 1], [], []>} : vector<2x32xf32>, vector<32x128xf32>, vector<2x128xf32> -> vector<2x128xf32>
    %104 = arith.addf %102, %103 : vector<2x128xf32>
    %105 = vector.extract_strided_slice %104 {offsets = [0, 0], sizes = [2, 32], strides = [1, 1]} : vector<2x128xf32> to vector<2x32xf32>
    %106 = arith.negf %105 : vector<2x32xf32>
    %107 = math.exp %106 : vector<2x32xf32>
    %cst_65 = arith.constant 1.000000e+00 : f32
    %108 = vector.broadcast %cst_65 : f32 to vector<2x32xf32>
    %109 = arith.addf %108, %107 : vector<2x32xf32>
    %110 = arith.divf %108, %109 : vector<2x32xf32>
    %111 = vector.extract_strided_slice %104 {offsets = [0, 32], sizes = [2, 32], strides = [1, 1]} : vector<2x128xf32> to vector<2x32xf32>
    %112 = arith.negf %111 : vector<2x32xf32>
    %113 = math.exp %112 : vector<2x32xf32>
    %cst_66 = arith.constant 1.000000e+00 : f32
    %114 = vector.broadcast %cst_66 : f32 to vector<2x32xf32>
    %115 = arith.addf %114, %113 : vector<2x32xf32>
    %116 = arith.divf %114, %115 : vector<2x32xf32>
    %117 = vector.extract_strided_slice %104 {offsets = [0, 64], sizes = [2, 32], strides = [1, 1]} : vector<2x128xf32> to vector<2x32xf32>
    %118 = math.tanh %117 : vector<2x32xf32>
    %119 = vector.extract_strided_slice %104 {offsets = [0, 96], sizes = [2, 32], strides = [1, 1]} : vector<2x128xf32> to vector<2x32xf32>
    %120 = arith.negf %119 : vector<2x32xf32>
    %121 = math.exp %120 : vector<2x32xf32>
    %cst_67 = arith.constant 1.000000e+00 : f32
    %122 = vector.broadcast %cst_67 : f32 to vector<2x32xf32>
    %123 = arith.addf %122, %121 : vector<2x32xf32>
    %124 = arith.divf %122, %123 : vector<2x32xf32>
    %125 = arith.mulf %116, %98 : vector<2x32xf32>
    %126 = arith.mulf %110, %118 : vector<2x32xf32>
    %127 = arith.addf %125, %126 : vector<2x32xf32>
    %128 = math.tanh %127 : vector<2x32xf32>
    %129 = arith.mulf %124, %128 : vector<2x32xf32>
    %c2_68 = arith.constant 2 : index
    %c0_69 = arith.constant 0 : index
    %130 = vector.load %arg12[%c2_68, %c0_69] : memref<16x32xf32, #tpu.memory_space<vmem>>, vector<2x32xf32>
    tpu.vector_store %arg12[%c2_68, %c0_69], %129 {strides = array<i32>} : memref<16x32xf32, #tpu.memory_space<vmem>>, vector<2x32xf32>,
    %131 = vector.extract_strided_slice %69 {offsets = [4, 0], sizes = [2, 128], strides = [1, 1]} : vector<16x128xf32> to vector<2x128xf32>
    %cst_70 = arith.constant dense<0.000000e+00> : vector<2x128xf32>
    %132 = tpu.matmul %129, %70, %cst_70 {dimension_numbers = #tpu.dot_dimension_numbers<[1], [0], [0], [1], [0, 0, 1, 1], [], []>} : vector<2x32xf32>, vector<32x128xf32>, vector<2x128xf32> -> vector<2x128xf32>
    %133 = arith.addf %131, %132 : vector<2x128xf32>
    %134 = vector.extract_strided_slice %133 {offsets = [0, 0], sizes = [2, 32], strides = [1, 1]} : vector<2x128xf32> to vector<2x32xf32>
    %135 = arith.negf %134 : vector<2x32xf32>
    %136 = math.exp %135 : vector<2x32xf32>
    %cst_71 = arith.constant 1.000000e+00 : f32
    %137 = vector.broadcast %cst_71 : f32 to vector<2x32xf32>
    %138 = arith.addf %137, %136 : vector<2x32xf32>
    %139 = arith.divf %137, %138 : vector<2x32xf32>
    %140 = vector.extract_strided_slice %133 {offsets = [0, 32], sizes = [2, 32], strides = [1, 1]} : vector<2x128xf32> to vector<2x32xf32>
    %141 = arith.negf %140 : vector<2x32xf32>
    %142 = math.exp %141 : vector<2x32xf32>
    %cst_72 = arith.constant 1.000000e+00 : f32
    %143 = vector.broadcast %cst_72 : f32 to vector<2x32xf32>
    %144 = arith.addf %143, %142 : vector<2x32xf32>
    %145 = arith.divf %143, %144 : vector<2x32xf32>
    %146 = vector.extract_strided_slice %133 {offsets = [0, 64], sizes = [2, 32], strides = [1, 1]} : vector<2x128xf32> to vector<2x32xf32>
    %147 = math.tanh %146 : vector<2x32xf32>
    %148 = vector.extract_strided_slice %133 {offsets = [0, 96], sizes = [2, 32], strides = [1, 1]} : vector<2x128xf32> to vector<2x32xf32>
    %149 = arith.negf %148 : vector<2x32xf32>
    %150 = math.exp %149 : vector<2x32xf32>
    %cst_73 = arith.constant 1.000000e+00 : f32
    %151 = vector.broadcast %cst_73 : f32 to vector<2x32xf32>
    %152 = arith.addf %151, %150 : vector<2x32xf32>
    %153 = arith.divf %151, %152 : vector<2x32xf32>
    %154 = arith.mulf %145, %127 : vector<2x32xf32>
    %155 = arith.mulf %139, %147 : vector<2x32xf32>
    %156 = arith.addf %154, %155 : vector<2x32xf32>
    %157 = math.tanh %156 : vector<2x32xf32>
    %158 = arith.mulf %153, %157 : vector<2x32xf32>
    %c4_74 = arith.constant 4 : index
    %c0_75 = arith.constant 0 : index
    %159 = vector.load %arg12[%c4_74, %c0_75] : memref<16x32xf32, #tpu.memory_space<vmem>>, vector<2x32xf32>
    tpu.vector_store %arg12[%c4_74, %c0_75], %158 {strides = array<i32>} : memref<16x32xf32, #tpu.memory_space<vmem>>, vector<2x32xf32>,
    %160 = vector.extract_strided_slice %69 {offsets = [6, 0], sizes = [2, 128], strides = [1, 1]} : vector<16x128xf32> to vector<2x128xf32>
    %cst_76 = arith.constant dense<0.000000e+00> : vector<2x128xf32>
    %161 = tpu.matmul %158, %70, %cst_76 {dimension_numbers = #tpu.dot_dimension_numbers<[1], [0], [0], [1], [0, 0, 1, 1], [], []>} : vector<2x32xf32>, vector<32x128xf32>, vector<2x128xf32> -> vector<2x128xf32>
    %162 = arith.addf %160, %161 : vector<2x128xf32>
    %163 = vector.extract_strided_slice %162 {offsets = [0, 0], sizes = [2, 32], strides = [1, 1]} : vector<2x128xf32> to vector<2x32xf32>
    %164 = arith.negf %163 : vector<2x32xf32>
    %165 = math.exp %164 : vector<2x32xf32>
    %cst_77 = arith.constant 1.000000e+00 : f32
    %166 = vector.broadcast %cst_77 : f32 to vector<2x32xf32>
    %167 = arith.addf %166, %165 : vector<2x32xf32>
    %168 = arith.divf %166, %167 : vector<2x32xf32>
    %169 = vector.extract_strided_slice %162 {offsets = [0, 32], sizes = [2, 32], strides = [1, 1]} : vector<2x128xf32> to vector<2x32xf32>
    %170 = arith.negf %169 : vector<2x32xf32>
    %171 = math.exp %170 : vector<2x32xf32>
    %cst_78 = arith.constant 1.000000e+00 : f32
    %172 = vector.broadcast %cst_78 : f32 to vector<2x32xf32>
    %173 = arith.addf %172, %171 : vector<2x32xf32>
    %174 = arith.divf %172, %173 : vector<2x32xf32>
    %175 = vector.extract_strided_slice %162 {offsets = [0, 64], sizes = [2, 32], strides = [1, 1]} : vector<2x128xf32> to vector<2x32xf32>
    %176 = math.tanh %175 : vector<2x32xf32>
    %177 = vector.extract_strided_slice %162 {offsets = [0, 96], sizes = [2, 32], strides = [1, 1]} : vector<2x128xf32> to vector<2x32xf32>
    %178 = arith.negf %177 : vector<2x32xf32>
    %179 = math.exp %178 : vector<2x32xf32>
    %cst_79 = arith.constant 1.000000e+00 : f32
    %180 = vector.broadcast %cst_79 : f32 to vector<2x32xf32>
    %181 = arith.addf %180, %179 : vector<2x32xf32>
    %182 = arith.divf %180, %181 : vector<2x32xf32>
    %183 = arith.mulf %174, %156 : vector<2x32xf32>
    %184 = arith.mulf %168, %176 : vector<2x32xf32>
    %185 = arith.addf %183, %184 : vector<2x32xf32>
    %186 = math.tanh %185 : vector<2x32xf32>
    %187 = arith.mulf %182, %186 : vector<2x32xf32>
    %c6_80 = arith.constant 6 : index
    %c0_81 = arith.constant 0 : index
    %188 = vector.load %arg12[%c6_80, %c0_81] : memref<16x32xf32, #tpu.memory_space<vmem>>, vector<2x32xf32>
    tpu.vector_store %arg12[%c6_80, %c0_81], %187 {strides = array<i32>} : memref<16x32xf32, #tpu.memory_space<vmem>>, vector<2x32xf32>,
    %189 = vector.extract_strided_slice %69 {offsets = [8, 0], sizes = [2, 128], strides = [1, 1]} : vector<16x128xf32> to vector<2x128xf32>
    %cst_82 = arith.constant dense<0.000000e+00> : vector<2x128xf32>
    %190 = tpu.matmul %187, %70, %cst_82 {dimension_numbers = #tpu.dot_dimension_numbers<[1], [0], [0], [1], [0, 0, 1, 1], [], []>} : vector<2x32xf32>, vector<32x128xf32>, vector<2x128xf32> -> vector<2x128xf32>
    %191 = arith.addf %189, %190 : vector<2x128xf32>
    %192 = vector.extract_strided_slice %191 {offsets = [0, 0], sizes = [2, 32], strides = [1, 1]} : vector<2x128xf32> to vector<2x32xf32>
    %193 = arith.negf %192 : vector<2x32xf32>
    %194 = math.exp %193 : vector<2x32xf32>
    %cst_83 = arith.constant 1.000000e+00 : f32
    %195 = vector.broadcast %cst_83 : f32 to vector<2x32xf32>
    %196 = arith.addf %195, %194 : vector<2x32xf32>
    %197 = arith.divf %195, %196 : vector<2x32xf32>
    %198 = vector.extract_strided_slice %191 {offsets = [0, 32], sizes = [2, 32], strides = [1, 1]} : vector<2x128xf32> to vector<2x32xf32>
    %199 = arith.negf %198 : vector<2x32xf32>
    %200 = math.exp %199 : vector<2x32xf32>
    %cst_84 = arith.constant 1.000000e+00 : f32
    %201 = vector.broadcast %cst_84 : f32 to vector<2x32xf32>
    %202 = arith.addf %201, %200 : vector<2x32xf32>
    %203 = arith.divf %201, %202 : vector<2x32xf32>
    %204 = vector.extract_strided_slice %191 {offsets = [0, 64], sizes = [2, 32], strides = [1, 1]} : vector<2x128xf32> to vector<2x32xf32>
    %205 = math.tanh %204 : vector<2x32xf32>
    %206 = vector.extract_strided_slice %191 {offsets = [0, 96], sizes = [2, 32], strides = [1, 1]} : vector<2x128xf32> to vector<2x32xf32>
    %207 = arith.negf %206 : vector<2x32xf32>
    %208 = math.exp %207 : vector<2x32xf32>
    %cst_85 = arith.constant 1.000000e+00 : f32
    %209 = vector.broadcast %cst_85 : f32 to vector<2x32xf32>
    %210 = arith.addf %209, %208 : vector<2x32xf32>
    %211 = arith.divf %209, %210 : vector<2x32xf32>
    %212 = arith.mulf %203, %185 : vector<2x32xf32>
    %213 = arith.mulf %197, %205 : vector<2x32xf32>
    %214 = arith.addf %212, %213 : vector<2x32xf32>
    %215 = math.tanh %214 : vector<2x32xf32>
    %216 = arith.mulf %211, %215 : vector<2x32xf32>
    %c8_86 = arith.constant 8 : index
    %c0_87 = arith.constant 0 : index
    %217 = vector.load %arg12[%c8_86, %c0_87] : memref<16x32xf32, #tpu.memory_space<vmem>>, vector<2x32xf32>
    tpu.vector_store %arg12[%c8_86, %c0_87], %216 {strides = array<i32>} : memref<16x32xf32, #tpu.memory_space<vmem>>, vector<2x32xf32>,
    %218 = vector.extract_strided_slice %69 {offsets = [10, 0], sizes = [2, 128], strides = [1, 1]} : vector<16x128xf32> to vector<2x128xf32>
    %cst_88 = arith.constant dense<0.000000e+00> : vector<2x128xf32>
    %219 = tpu.matmul %216, %70, %cst_88 {dimension_numbers = #tpu.dot_dimension_numbers<[1], [0], [0], [1], [0, 0, 1, 1], [], []>} : vector<2x32xf32>, vector<32x128xf32>, vector<2x128xf32> -> vector<2x128xf32>
    %220 = arith.addf %218, %219 : vector<2x128xf32>
    %221 = vector.extract_strided_slice %220 {offsets = [0, 0], sizes = [2, 32], strides = [1, 1]} : vector<2x128xf32> to vector<2x32xf32>
    %222 = arith.negf %221 : vector<2x32xf32>
    %223 = math.exp %222 : vector<2x32xf32>
    %cst_89 = arith.constant 1.000000e+00 : f32
    %224 = vector.broadcast %cst_89 : f32 to vector<2x32xf32>
    %225 = arith.addf %224, %223 : vector<2x32xf32>
    %226 = arith.divf %224, %225 : vector<2x32xf32>
    %227 = vector.extract_strided_slice %220 {offsets = [0, 32], sizes = [2, 32], strides = [1, 1]} : vector<2x128xf32> to vector<2x32xf32>
    %228 = arith.negf %227 : vector<2x32xf32>
    %229 = math.exp %228 : vector<2x32xf32>
    %cst_90 = arith.constant 1.000000e+00 : f32
    %230 = vector.broadcast %cst_90 : f32 to vector<2x32xf32>
    %231 = arith.addf %230, %229 : vector<2x32xf32>
    %232 = arith.divf %230, %231 : vector<2x32xf32>
    %233 = vector.extract_strided_slice %220 {offsets = [0, 64], sizes = [2, 32], strides = [1, 1]} : vector<2x128xf32> to vector<2x32xf32>
    %234 = math.tanh %233 : vector<2x32xf32>
    %235 = vector.extract_strided_slice %220 {offsets = [0, 96], sizes = [2, 32], strides = [1, 1]} : vector<2x128xf32> to vector<2x32xf32>
    %236 = arith.negf %235 : vector<2x32xf32>
    %237 = math.exp %236 : vector<2x32xf32>
    %cst_91 = arith.constant 1.000000e+00 : f32
    %238 = vector.broadcast %cst_91 : f32 to vector<2x32xf32>
    %239 = arith.addf %238, %237 : vector<2x32xf32>
    %240 = arith.divf %238, %239 : vector<2x32xf32>
    %241 = arith.mulf %232, %214 : vector<2x32xf32>
    %242 = arith.mulf %226, %234 : vector<2x32xf32>
    %243 = arith.addf %241, %242 : vector<2x32xf32>
    %244 = math.tanh %243 : vector<2x32xf32>
    %245 = arith.mulf %240, %244 : vector<2x32xf32>
    %c10_92 = arith.constant 10 : index
    %c0_93 = arith.constant 0 : index
    %246 = vector.load %arg12[%c10_92, %c0_93] : memref<16x32xf32, #tpu.memory_space<vmem>>, vector<2x32xf32>
    tpu.vector_store %arg12[%c10_92, %c0_93], %245 {strides = array<i32>} : memref<16x32xf32, #tpu.memory_space<vmem>>, vector<2x32xf32>,
    %247 = vector.extract_strided_slice %69 {offsets = [12, 0], sizes = [2, 128], strides = [1, 1]} : vector<16x128xf32> to vector<2x128xf32>
    %cst_94 = arith.constant dense<0.000000e+00> : vector<2x128xf32>
    %248 = tpu.matmul %245, %70, %cst_94 {dimension_numbers = #tpu.dot_dimension_numbers<[1], [0], [0], [1], [0, 0, 1, 1], [], []>} : vector<2x32xf32>, vector<32x128xf32>, vector<2x128xf32> -> vector<2x128xf32>
    %249 = arith.addf %247, %248 : vector<2x128xf32>
    %250 = vector.extract_strided_slice %249 {offsets = [0, 0], sizes = [2, 32], strides = [1, 1]} : vector<2x128xf32> to vector<2x32xf32>
    %251 = arith.negf %250 : vector<2x32xf32>
    %252 = math.exp %251 : vector<2x32xf32>
    %cst_95 = arith.constant 1.000000e+00 : f32
    %253 = vector.broadcast %cst_95 : f32 to vector<2x32xf32>
    %254 = arith.addf %253, %252 : vector<2x32xf32>
    %255 = arith.divf %253, %254 : vector<2x32xf32>
    %256 = vector.extract_strided_slice %249 {offsets = [0, 32], sizes = [2, 32], strides = [1, 1]} : vector<2x128xf32> to vector<2x32xf32>
    %257 = arith.negf %256 : vector<2x32xf32>
    %258 = math.exp %257 : vector<2x32xf32>
    %cst_96 = arith.constant 1.000000e+00 : f32
    %259 = vector.broadcast %cst_96 : f32 to vector<2x32xf32>
    %260 = arith.addf %259, %258 : vector<2x32xf32>
    %261 = arith.divf %259, %260 : vector<2x32xf32>
    %262 = vector.extract_strided_slice %249 {offsets = [0, 64], sizes = [2, 32], strides = [1, 1]} : vector<2x128xf32> to vector<2x32xf32>
    %263 = math.tanh %262 : vector<2x32xf32>
    %264 = vector.extract_strided_slice %249 {offsets = [0, 96], sizes = [2, 32], strides = [1, 1]} : vector<2x128xf32> to vector<2x32xf32>
    %265 = arith.negf %264 : vector<2x32xf32>
    %266 = math.exp %265 : vector<2x32xf32>
    %cst_97 = arith.constant 1.000000e+00 : f32
    %267 = vector.broadcast %cst_97 : f32 to vector<2x32xf32>
    %268 = arith.addf %267, %266 : vector<2x32xf32>
    %269 = arith.divf %267, %268 : vector<2x32xf32>
    %270 = arith.mulf %261, %243 : vector<2x32xf32>
    %271 = arith.mulf %255, %263 : vector<2x32xf32>
    %272 = arith.addf %270, %271 : vector<2x32xf32>
    %273 = math.tanh %272 : vector<2x32xf32>
    %274 = arith.mulf %269, %273 : vector<2x32xf32>
    %c12_98 = arith.constant 12 : index
    %c0_99 = arith.constant 0 : index
    %275 = vector.load %arg12[%c12_98, %c0_99] : memref<16x32xf32, #tpu.memory_space<vmem>>, vector<2x32xf32>
    tpu.vector_store %arg12[%c12_98, %c0_99], %274 {strides = array<i32>} : memref<16x32xf32, #tpu.memory_space<vmem>>, vector<2x32xf32>,
    %276 = vector.extract_strided_slice %69 {offsets = [14, 0], sizes = [2, 128], strides = [1, 1]} : vector<16x128xf32> to vector<2x128xf32>
    %cst_100 = arith.constant dense<0.000000e+00> : vector<2x128xf32>
    %277 = tpu.matmul %274, %70, %cst_100 {dimension_numbers = #tpu.dot_dimension_numbers<[1], [0], [0], [1], [0, 0, 1, 1], [], []>} : vector<2x32xf32>, vector<32x128xf32>, vector<2x128xf32> -> vector<2x128xf32>
    %278 = arith.addf %276, %277 : vector<2x128xf32>
    %279 = vector.extract_strided_slice %278 {offsets = [0, 0], sizes = [2, 32], strides = [1, 1]} : vector<2x128xf32> to vector<2x32xf32>
    %280 = arith.negf %279 : vector<2x32xf32>
    %281 = math.exp %280 : vector<2x32xf32>
    %cst_101 = arith.constant 1.000000e+00 : f32
    %282 = vector.broadcast %cst_101 : f32 to vector<2x32xf32>
    %283 = arith.addf %282, %281 : vector<2x32xf32>
    %284 = arith.divf %282, %283 : vector<2x32xf32>
    %285 = vector.extract_strided_slice %278 {offsets = [0, 32], sizes = [2, 32], strides = [1, 1]} : vector<2x128xf32> to vector<2x32xf32>
    %286 = arith.negf %285 : vector<2x32xf32>
    %287 = math.exp %286 : vector<2x32xf32>
    %cst_102 = arith.constant 1.000000e+00 : f32
    %288 = vector.broadcast %cst_102 : f32 to vector<2x32xf32>
    %289 = arith.addf %288, %287 : vector<2x32xf32>
    %290 = arith.divf %288, %289 : vector<2x32xf32>
    %291 = vector.extract_strided_slice %278 {offsets = [0, 64], sizes = [2, 32], strides = [1, 1]} : vector<2x128xf32> to vector<2x32xf32>
    %292 = math.tanh %291 : vector<2x32xf32>
    %293 = vector.extract_strided_slice %278 {offsets = [0, 96], sizes = [2, 32], strides = [1, 1]} : vector<2x128xf32> to vector<2x32xf32>
    %294 = arith.negf %293 : vector<2x32xf32>
    %295 = math.exp %294 : vector<2x32xf32>
    %cst_103 = arith.constant 1.000000e+00 : f32
    %296 = vector.broadcast %cst_103 : f32 to vector<2x32xf32>
    %297 = arith.addf %296, %295 : vector<2x32xf32>
    %298 = arith.divf %296, %297 : vector<2x32xf32>
    %299 = arith.mulf %290, %272 : vector<2x32xf32>
    %300 = arith.mulf %284, %292 : vector<2x32xf32>
    %301 = arith.addf %299, %300 : vector<2x32xf32>
    %302 = math.tanh %301 : vector<2x32xf32>
    %303 = arith.mulf %298, %302 : vector<2x32xf32>
    %c14_104 = arith.constant 14 : index
    %c0_105 = arith.constant 0 : index
    %304 = vector.load %arg12[%c14_104, %c0_105] : memref<16x32xf32, #tpu.memory_space<vmem>>, vector<2x32xf32>
    tpu.vector_store %arg12[%c14_104, %c0_105], %303 {strides = array<i32>} : memref<16x32xf32, #tpu.memory_space<vmem>>, vector<2x32xf32>,
    %c0_106 = arith.constant 0 : index
    %c0_107 = arith.constant 0 : index
    %305 = vector.load %arg12[%c0_106, %c0_107] : memref<16x32xf32, #tpu.memory_space<vmem>>, vector<16x32xf32>
    %cst_108 = arith.constant dense<0.000000e+00> : vector<32xf32>
    %306 = vector.multi_reduction <add>, %305, %cst_108 [0] : vector<16x32xf32> to vector<32xf32>
    %307 = vector.shape_cast %306 : vector<32xf32> to vector<1x32xf32>
    %cst_109 = arith.constant 1.600000e+01 : f32
    %308 = vector.broadcast %cst_109 : f32 to vector<1x32xf32>
    %309 = arith.divf %307, %308 : vector<1x32xf32>
    %310 = vector.broadcast %309 : vector<1x32xf32> to vector<16x32xf32>
    %311 = arith.subf %305, %310 : vector<16x32xf32>
    %312 = arith.mulf %311, %311 : vector<16x32xf32>
    %cst_110 = arith.constant dense<0.000000e+00> : vector<32xf32>
    %313 = vector.multi_reduction <add>, %312, %cst_110 [0] : vector<16x32xf32> to vector<32xf32>
    %314 = vector.shape_cast %313 : vector<32xf32> to vector<1x32xf32>
    %cst_111 = arith.constant 1.600000e+01 : f32
    %315 = vector.broadcast %cst_111 : f32 to vector<1x32xf32>
    %316 = arith.divf %314, %315 : vector<1x32xf32>
    %317 = vector.broadcast %309 : vector<1x32xf32> to vector<16x32xf32>
    %318 = arith.subf %305, %317 : vector<16x32xf32>
    %cst_112 = arith.constant 9.99999974E-6 : f32
    %319 = vector.broadcast %cst_112 : f32 to vector<1x32xf32>
    %320 = arith.addf %316, %319 : vector<1x32xf32>
    %321 = math.rsqrt %320 : vector<1x32xf32>
    %322 = vector.broadcast %321 : vector<1x32xf32> to vector<16x32xf32>
    %323 = arith.mulf %318, %322 : vector<16x32xf32>
    %c0_113 = arith.constant 0 : index
    %c0_114 = arith.constant 0 : index
    %324 = vector.load %arg6[%c0_113, %c0_114] : memref<1x32xf32, #tpu.memory_space<vmem>>, vector<1x32xf32>
    %325 = vector.broadcast %324 : vector<1x32xf32> to vector<16x32xf32>
    %326 = arith.mulf %323, %325 : vector<16x32xf32>
    %c0_115 = arith.constant 0 : index
    %c0_116 = arith.constant 0 : index
    %327 = vector.load %arg7[%c0_115, %c0_116] : memref<1x32xf32, #tpu.memory_space<vmem>>, vector<1x32xf32>
    %328 = vector.broadcast %327 : vector<1x32xf32> to vector<16x32xf32>
    %329 = arith.addf %326, %328 : vector<16x32xf32>
    %c0_117 = arith.constant 0 : index
    %c0_118 = arith.constant 0 : index
    %330 = vector.load %arg8[%c0_117, %c0_118] : memref<32x128xf32, #tpu.memory_space<vmem>>, vector<32x128xf32>
    %cst_119 = arith.constant dense<0.000000e+00> : vector<16x128xf32>
    %331 = tpu.matmul %329, %330, %cst_119 {dimension_numbers = #tpu.dot_dimension_numbers<[1], [0], [0], [1], [0, 0, 1, 1], [], []>} : vector<16x32xf32>, vector<32x128xf32>, vector<16x128xf32> -> vector<16x128xf32>
    %c0_120 = arith.constant 0 : index
    %c0_121 = arith.constant 0 : index
    %332 = vector.load %arg9[%c0_120, %c0_121] : memref<1x128xf32, #tpu.memory_space<vmem>>, vector<1x128xf32>
    %333 = vector.broadcast %332 : vector<1x128xf32> to vector<16x128xf32>
    %334 = arith.addf %331, %333 : vector<16x128xf32>
    %c0_122 = arith.constant 0 : index
    %c0_123 = arith.constant 0 : index
    %335 = vector.load %arg10[%c0_122, %c0_123] : memref<16x128xf32, #tpu.memory_space<vmem>>, vector<16x128xf32>
    tpu.vector_store %arg10[%c0_122, %c0_123], %334 {strides = array<i32>} : memref<16x128xf32, #tpu.memory_space<vmem>>, vector<16x128xf32>,
    return
  }
  func.func @transform_0(%arg0: i32, %arg1: memref<16xi32, #tpu.memory_space<smem>>) -> (i32, i32) {
    %c0_i32 = arith.constant 0 : i32
    %c0_i32_0 = arith.constant 0 : i32
    %c0_i32_1 = arith.constant 0 : i32
    return %c0_i32, %c0_i32_0 : i32, i32
  }
  func.func @transform_1(%arg0: i32, %arg1: memref<16xi32, #tpu.memory_space<smem>>) -> (i32, i32) {
    %c0_i32 = arith.constant 0 : i32
    %c0_i32_0 = arith.constant 0 : i32
    %c0_i32_1 = arith.constant 0 : i32
    return %c0_i32, %c0_i32_0 : i32, i32
  }
  func.func @transform_2(%arg0: i32, %arg1: memref<16xi32, #tpu.memory_space<smem>>) -> (i32, i32) {
    %c0_i32 = arith.constant 0 : i32
    %c0_i32_0 = arith.constant 0 : i32
    %c0_i32_1 = arith.constant 0 : i32
    return %c0_i32, %c0_i32_0 : i32, i32
  }
  func.func @transform_3(%arg0: i32, %arg1: memref<16xi32, #tpu.memory_space<smem>>) -> (i32, i32) {
    %c0_i32 = arith.constant 0 : i32
    %c0_i32_0 = arith.constant 0 : i32
    %c0_i32_1 = arith.constant 0 : i32
    return %c0_i32, %c0_i32_0 : i32, i32
  }
  func.func @transform_4(%arg0: i32, %arg1: memref<16xi32, #tpu.memory_space<smem>>) -> (i32, i32) {
    %c0_i32 = arith.constant 0 : i32
    %c0_i32_0 = arith.constant 0 : i32
    %c0_i32_1 = arith.constant 0 : i32
    return %c0_i32, %c0_i32_0 : i32, i32
  }
  func.func @transform_5(%arg0: i32, %arg1: memref<16xi32, #tpu.memory_space<smem>>) -> (i32, i32) {
    %c0_i32 = arith.constant 0 : i32
    %c0_i32_0 = arith.constant 0 : i32
    %c0_i32_1 = arith.constant 0 : i32
    return %c0_i32, %c0_i32_0 : i32, i32
  }
  func.func @transform_6(%arg0: i32, %arg1: memref<16xi32, #tpu.memory_space<smem>>) -> (i32, i32) {
    %c0_i32 = arith.constant 0 : i32
    %c0_i32_0 = arith.constant 0 : i32
    %c0_i32_1 = arith.constant 0 : i32
    return %c0_i32, %c0_i32_0 : i32, i32
  }
  func.func @transform_7(%arg0: i32, %arg1: memref<16xi32, #tpu.memory_space<smem>>) -> (i32, i32) {
    %c0_i32 = arith.constant 0 : i32
    %c0_i32_0 = arith.constant 0 : i32
    %c0_i32_1 = arith.constant 0 : i32
    return %c0_i32, %c0_i32_0 : i32, i32
  }
  func.func @transform_8(%arg0: i32, %arg1: memref<16xi32, #tpu.memory_space<smem>>) -> (i32, i32) {
    %c0_i32 = arith.constant 0 : i32
    %c0_i32_0 = arith.constant 0 : i32
    %c0_i32_1 = arith.constant 0 : i32
    return %c0_i32, %c0_i32_0 : i32, i32
  }
}

</mosaic_0001>

<llo_original>
// kernel: tpu_custom_call.1
$region0: #{tpu_custom_call.1}
  #allocation0 [shape = 'u32[]', space=smem, size = 0x4, offset = 0x4, fixed_abs, tag = 'smem constant byte address 0x4 - core index']
  #allocation1 [shape = 'u32[144,128]{1,0:T(1,128)}', space=vmem, size = 0x12000, scoped, tag = 'internal scratch']
  #allocation2 [shape = 'f32[16,32]{1,0:T(8,128)}', space=vmem, size = 0x2000, scoped, tag = 'scratch operand']
  #allocation3 [shape = 'f32[16,32]{1,0:T(8,128)}', space=vmem, size = 0x2000, scoped, tag = 'scratch operand']
  #allocation4 [shape = 's32[1]{0}', space=sflag, size = 0x4, scoped, tag = 'scoped memory for tpu_custom_call.1']
  #allocation5 [shape = 'u8[512]{0}', space=smem, size = 0x200, scoped, tag = 'prefetched SMEM operand 0']
  %s0 = inlined_call_operand.vmem [shape: s32[16], index: 0, kind: input, shape index: {}]
  %s1 = inlined_call_operand.vmem [shape: f32[128,32], index: 1, kind: input, shape index: {}]
  %s2 = inlined_call_operand.vmem [shape: f32[32,128], index: 2, kind: input, shape index: {}]
  %s3 = inlined_call_operand.vmem [shape: f32[32,128], index: 3, kind: input, shape index: {}]
  %s4 = inlined_call_operand.vmem [shape: f32[1,128], index: 4, kind: input, shape index: {}]
  %s5 = inlined_call_operand.vmem [shape: f32[1,32], index: 5, kind: input, shape index: {}]
  %s6 = inlined_call_operand.vmem [shape: f32[1,32], index: 6, kind: input, shape index: {}]
  %s7 = inlined_call_operand.vmem [shape: f32[32,128], index: 7, kind: input, shape index: {}]
  %s8 = inlined_call_operand.vmem [shape: f32[1,128], index: 8, kind: input, shape index: {}]
  %s9 = inlined_call_operand.hbm [shape: f32[16,128], index: 9, kind: output, shape index: {}]
  %s10 = sld [smem:[#allocation0]]
  $region42: #{tpu_custom_call.1} parent=0
    _
  %s12 = ssub.s32 1, %s10
  %s13 = scalar_select 0, %s12, %s10
  %s14 = sshll.u32 %s0, 4
  %s15 = int_to_ptr.vmem [resolvable:$true] %s14
  %17 = dma.vmem_to_smem %s15, 16, [#allocation5], [#allocation4]
  %18 = dma.done [#allocation4], 16
  %19 = sfence
  $region1: #{tpu_custom_call.1} parent=0
    #allocation6 [shape = 'u8[8192]{0}', space=vmem, size = 0x2000, scoped, tag = 'output window, operand 0, single buffered']
    #allocation7 [shape = 's32[1]{0}', space=sflag, size = 0x4, scoped, tag = 'scoped memory for tpu_custom_call.1']
    %20 = vsyncpa [#allocation7], 0
    // Predicated region
    $region2: #{tpu_custom_call.1} parent=1 // pred_check
      _
    $region3: #{tpu_custom_call.1} parent=1 // pred_check_branch
      %22 = sbr.rel (0) target = $region5
    $region4: #{tpu_custom_call.1} parent=1 // pred_region
      _
    $region5: #{tpu_custom_call.1} parent=1 // pred_fallthru
      _
    // Predicated region
    $region6: #{tpu_custom_call.1} parent=1 // pred_check
      _
    $region7: #{tpu_custom_call.1} parent=1 // pred_check_branch
      %24 = sbr.rel (0) target = $region9
    $region8: #{tpu_custom_call.1} parent=1 // pred_region
      _
    $region9: #{tpu_custom_call.1} parent=1 // pred_fallthru
      _
    // Predicated region
    $region10: #{tpu_custom_call.1} parent=1 // pred_check
      _
    $region11: #{tpu_custom_call.1} parent=1 // pred_check_branch
      %26 = sbr.rel (0) target = $region13
    $region12: #{tpu_custom_call.1} parent=1 // pred_region
      _
    $region13: #{tpu_custom_call.1} parent=1 // pred_fallthru
      _
    // Predicated region
    $region14: #{tpu_custom_call.1} parent=1 // pred_check
      _
    $region15: #{tpu_custom_call.1} parent=1 // pred_check_branch
      %28 = sbr.rel (0) target = $region17
    $region16: #{tpu_custom_call.1} parent=1 // pred_region
      _
    $region17: #{tpu_custom_call.1} parent=1 // pred_fallthru
      _
    // Predicated region
    $region18: #{tpu_custom_call.1} parent=1 // pred_check
      _
    $region19: #{tpu_custom_call.1} parent=1 // pred_check_branch
      %30 = sbr.rel (0) target = $region21
    $region20: #{tpu_custom_call.1} parent=1 // pred_region
      _
    $region21: #{tpu_custom_call.1} parent=1 // pred_fallthru
      _
    // Predicated region
    $region22: #{tpu_custom_call.1} parent=1 // pred_check
      _
    $region23: #{tpu_custom_call.1} parent=1 // pred_check_branch
      %32 = sbr.rel (0) target = $region25
    $region24: #{tpu_custom_call.1} parent=1 // pred_region
      _
    $region25: #{tpu_custom_call.1} parent=1 // pred_fallthru
      _
    // Predicated region
    $region26: #{tpu_custom_call.1} parent=1 // pred_check
      _
    $region27: #{tpu_custom_call.1} parent=1 // pred_check_branch
      %34 = sbr.rel (0) target = $region29
    $region28: #{tpu_custom_call.1} parent=1 // pred_region
      _
    $region29: #{tpu_custom_call.1} parent=1 // pred_fallthru
      _
    // Predicated region
    $region30: #{tpu_custom_call.1} parent=1 // pred_check
      _
    $region31: #{tpu_custom_call.1} parent=1 // pred_check_branch
      %36 = sbr.rel (0) target = $region33
    $region32: #{tpu_custom_call.1} parent=1 // pred_region
      _
    $region33: #{tpu_custom_call.1} parent=1 // pred_fallthru
      _
    %s37 = sld [smem:[#allocation5]]
    %s38 = scalar_lea.vmem %s1, %s37
    %v39 = vld [vmem:[%s38] sm:$0x1]
    %vm40 = vcmask 253952
    %41 = vst.msk [vmem:[#allocation2] sm:$0x1] %vm40, %v39
    %s42 = sld [smem:[#allocation5 + $0x1]]
    %s43 = scalar_lea.vmem %s1, %s42
    %v44 = vld [vmem:[%s43] sm:$0x1]
    %45 = vst.msk [vmem:[#allocation2 + $0x1] sm:$0x1] %vm40, %v44
    %s46 = sld [smem:[#allocation5 + $0x2]]
    %s47 = scalar_lea.vmem %s1, %s46
    %v48 = vld [vmem:[%s47] sm:$0x1]
    %49 = vst.msk [vmem:[#allocation2 + $0x2] sm:$0x1] %vm40, %v48
    %s50 = sld [smem:[#allocation5 + $0x3]]
    %s51 = scalar_lea.vmem %s1, %s50
    %v52 = vld [vmem:[%s51] sm:$0x1]
    %53 = vst.msk [vmem:[#allocation2 + $0x3] sm:$0x1] %vm40, %v52
    %s54 = sld [smem:[#allocation5 + $0x4]]
    %s55 = scalar_lea.vmem %s1, %s54
    %v56 = vld [vmem:[%s55] sm:$0x1]
    %57 = vst.msk [vmem:[#allocation2 + $0x4] sm:$0x1] %vm40, %v56
    %s58 = sld [smem:[#allocation5 + $0x5]]
    %s59 = scalar_lea.vmem %s1, %s58
    %v60 = vld [vmem:[%s59] sm:$0x1]
    %61 = vst.msk [vmem:[#allocation2 + $0x5] sm:$0x1] %vm40, %v60
    %s62 = sld [smem:[#allocation5 + $0x6]]
    %s63 = scalar_lea.vmem %s1, %s62
    %v64 = vld [vmem:[%s63] sm:$0x1]
    %65 = vst.msk [vmem:[#allocation2 + $0x6] sm:$0x1] %vm40, %v64
    %s66 = sld [smem:[#allocation5 + $0x7]]
    %s67 = scalar_lea.vmem %s1, %s66
    %v68 = vld [vmem:[%s67] sm:$0x1]
    %69 = vst.msk [vmem:[#allocation2 + $0x7] sm:$0x1] %vm40, %v68
    %s70 = sld [smem:[#allocation5 + $0x8]]
    %s71 = scalar_lea.vmem %s1, %s70
    %v72 = vld [vmem:[%s71] sm:$0x1]
    %73 = vst.msk [vmem:[#allocation2 + $0x8] sm:$0x1] %vm40, %v72
    %s74 = sld [smem:[#allocation5 + $0x9]]
    %s75 = scalar_lea.vmem %s1, %s74
    %v76 = vld [vmem:[%s75] sm:$0x1]
    %77 = vst.msk [vmem:[#allocation2 + $0x9] sm:$0x1] %vm40, %v76
    %s78 = sld [smem:[#allocation5 + $0xa]]
    %s79 = scalar_lea.vmem %s1, %s78
    %v80 = vld [vmem:[%s79] sm:$0x1]
    %81 = vst.msk [vmem:[#allocation2 + $0xa] sm:$0x1] %vm40, %v80
    %s82 = sld [smem:[#allocation5 + $0xb]]
    %s83 = scalar_lea.vmem %s1, %s82
    %v84 = vld [vmem:[%s83] sm:$0x1]
    %85 = vst.msk [vmem:[#allocation2 + $0xb] sm:$0x1] %vm40, %v84
    %s86 = sld [smem:[#allocation5 + $0xc]]
    %s87 = scalar_lea.vmem %s1, %s86
    %v88 = vld [vmem:[%s87] sm:$0x1]
    %89 = vst.msk [vmem:[#allocation2 + $0xc] sm:$0x1] %vm40, %v88
    %s90 = sld [smem:[#allocation5 + $0xd]]
    %s91 = scalar_lea.vmem %s1, %s90
    %v92 = vld [vmem:[%s91] sm:$0x1]
    %93 = vst.msk [vmem:[#allocation2 + $0xd] sm:$0x1] %vm40, %v92
    %s94 = sld [smem:[#allocation5 + $0xe]]
    %s95 = scalar_lea.vmem %s1, %s94
    %v96 = vld [vmem:[%s95] sm:$0x1]
    %97 = vst.msk [vmem:[#allocation2 + $0xe] sm:$0x1] %vm40, %v96
    %s98 = sld [smem:[#allocation5 + $0xf]]
    %s99 = scalar_lea.vmem %s1, %s98
    %v100 = vld [vmem:[%s99] sm:$0x1]
    %101 = vst.msk [vmem:[#allocation2 + $0xf] sm:$0x1] %vm40, %v100
    %v102 = vld [vmem:[#allocation2] sm:$0xff]
    %v103 = vld [vmem:[#allocation2 + $0x8] sm:$0xff]
    %v104 = vld [vmem:[%s2] sm:$0xff]
    %v105 = vld [vmem:[%s2 + $0x8] sm:$0xff]
    %v106 = vld [vmem:[%s2 + $0x10] sm:$0xff]
    %v107 = vld [vmem:[%s2 + $0x18] sm:$0xff]
    %v108 = vld [vmem:[%s4] sm:$0x1]
    %v110 = vlaneseq
    %v111 = vshrl.u32 %v110, 7
    %v112 = vsub.s32 0, %v111
    %v113 = vrot.slane %v108, %v112
    %vm115 = vcmask 261120
    %v117 = vsel %vm115, %v102, 0
    %v120 = vsel %vm115, %v103, 0
    %122 = vmatprep.subr.mxu0 0.0
    %123 = vmatpush1.msra.mxu0 0.0
    %124 = vmatprep.subr.mxu0 0.0
    %125 = vmatpush1.msra.mxu0 0.0
    %126 = vmatprep.subr.mxu0 0.0
    %127 = vmatpush1.msra.mxu0 0.0
    %128 = vmatprep.subr.mxu0 0.0
    %129 = vmatpush1.msra.mxu0 0.0
    %130 = vmatprep.subr.mxu0 0.0
    %131 = vmatpush1.msra.mxu0 0.0
    %132 = vmatprep.subr.mxu0 0.0
    %133 = vmatpush1.msra.mxu0 0.0
    %134 = vmatprep.subr.mxu0 0.0
    %135 = vmatpush1.msra.mxu0 0.0
    %136 = vmatprep.subr.mxu0 0.0
    %137 = vmatpush1.msra.mxu0 0.0
    %138 = vmatprep.subr.mxu0 0.0
    %139 = vmatpush1.msra.mxu0 0.0
    %140 = vmatprep.subr.mxu0 0.0
    %141 = vmatpush1.msra.mxu0 0.0
    %142 = vmatprep.subr.mxu0 0.0
    %143 = vmatpush1.msra.mxu0 0.0
    %144 = vmatprep.subr.mxu0 0.0
    %145 = vmatpush1.msra.mxu0 0.0
    %146 = vmatprep.subr.mxu0 0.0
    %147 = vmatpush1.msra.mxu0 %v107
    %148 = vmatprep.subr.mxu0 0.0
    %149 = vmatpush1.msra.mxu0 %v106
    %150 = vmatprep.subr.mxu0 0.0
    %151 = vmatpush1.msra.mxu0 %v105
    %152 = vmatprep.subr.mxu0 0.0
    %153 = vmatpush1.msra.mxu0 %v104
    %154 = vmatprep.subr.mxu0 0.0
    %155 = vmatpush2.msra.mxu0 0.0
    %156 = vmatprep.subr.mxu0 0.0
    %157 = vmatpush2.msra.mxu0 0.0
    %158 = vmatprep.subr.mxu0 0.0
    %159 = vmatpush2.msra.mxu0 0.0
    %160 = vmatprep.subr.mxu0 0.0
    %161 = vmatpush2.msra.mxu0 0.0
    %162 = vmatprep.subr.mxu0 0.0
    %163 = vmatpush2.msra.mxu0 0.0
    %164 = vmatprep.subr.mxu0 0.0
    %165 = vmatpush2.msra.mxu0 0.0
    %166 = vmatprep.subr.mxu0 0.0
    %167 = vmatpush2.msra.mxu0 0.0
    %168 = vmatprep.subr.mxu0 0.0
    %169 = vmatpush2.msra.mxu0 0.0
    %170 = vmatprep.subr.mxu0 0.0
    %171 = vmatpush2.msra.mxu0 0.0
    %172 = vmatprep.subr.mxu0 0.0
    %173 = vmatpush2.msra.mxu0 0.0
    %174 = vmatprep.subr.mxu0 0.0
    %175 = vmatpush2.msra.mxu0 0.0
    %176 = vmatprep.subr.mxu0 0.0
    %177 = vmatpush2.msra.mxu0 0.0
    %178 = vmatprep.subr.mxu0 0.0
    %179 = vmatpush2.msra.mxu0 0.0
    %180 = vmatprep.subr.mxu0 0.0
    %181 = vmatpush2.msra.mxu0 0.0
    %182 = vmatprep.subr.mxu0 0.0
    %183 = vmatpush2.msra.mxu0 0.0
    %184 = vmatprep.subr.mxu0 0.0
    %185 = vmatpush2.msra.mxu0 0.0
    %186 = vmatprep.mubr.f32.mxu0 0.0
    %187 = vmatmul.mubr.f32.gmra.mxu0 %v117
    %v188 = vpop.f32.mrf.mxu0
    %v189 = vadd.f32 %v113, %v188
    %v190 = vpop.f32.mrf.mxu0
    %191 = vmatprep.mubr.f32.mxu0 0.0
    %192 = vmatmul.mubr.f32.gmra.mxu0 %v120
    %v193 = vpop.f32.mrf.mxu0
    %v194 = vadd.f32 %v113, %v193
    %v195 = vpop.f32.mrf.mxu0
    %196 = vdwg.mxu0
    %v197 = vld [vmem:[%s3] sm:$0xff]
    %v198 = vld [vmem:[%s3 + $0x8] sm:$0xff]
    %v199 = vld [vmem:[%s3 + $0x10] sm:$0xff]
    %v200 = vld [vmem:[%s3 + $0x18] sm:$0xff]
    %v202 = vsel %vm115, 0.0, 0
    %204 = vmatprep.subr.mxu0 0.0
    %205 = vmatpush1.msra.mxu0 0.0
    %206 = vmatprep.subr.mxu0 0.0
    %207 = vmatpush1.msra.mxu0 0.0
    %208 = vmatprep.subr.mxu0 0.0
    %209 = vmatpush1.msra.mxu0 0.0
    %210 = vmatprep.subr.mxu0 0.0
    %211 = vmatpush1.msra.mxu0 0.0
    %212 = vmatprep.subr.mxu0 0.0
    %213 = vmatpush1.msra.mxu0 0.0
    %214 = vmatprep.subr.mxu0 0.0
    %215 = vmatpush1.msra.mxu0 0.0
    %216 = vmatprep.subr.mxu0 0.0
    %217 = vmatpush1.msra.mxu0 0.0
    %218 = vmatprep.subr.mxu0 0.0
    %219 = vmatpush1.msra.mxu0 0.0
    %220 = vmatprep.subr.mxu0 0.0
    %221 = vmatpush1.msra.mxu0 0.0
    %222 = vmatprep.subr.mxu0 0.0
    %223 = vmatpush1.msra.mxu0 0.0
    %224 = vmatprep.subr.mxu0 0.0
    %225 = vmatpush1.msra.mxu0 0.0
    %226 = vmatprep.subr.mxu0 0.0
    %227 = vmatpush1.msra.mxu0 0.0
    %228 = vmatprep.subr.mxu0 0.0
    %229 = vmatpush1.msra.mxu0 %v200
    %230 = vmatprep.subr.mxu0 0.0
    %231 = vmatpush1.msra.mxu0 %v199
    %232 = vmatprep.subr.mxu0 0.0
    %233 = vmatpush1.msra.mxu0 %v198
    %234 = vmatprep.subr.mxu0 0.0
    %235 = vmatpush1.msra.mxu0 %v197
    %236 = vmatprep.subr.mxu0 0.0
    %237 = vmatpush2.msra.mxu0 0.0
    %238 = vmatprep.subr.mxu0 0.0
    %239 = vmatpush2.msra.mxu0 0.0
    %240 = vmatprep.subr.mxu0 0.0
    %241 = vmatpush2.msra.mxu0 0.0
    %242 = vmatprep.subr.mxu0 0.0
    %243 = vmatpush2.msra.mxu0 0.0
    %244 = vmatprep.subr.mxu0 0.0
    %245 = vmatpush2.msra.mxu0 0.0
    %246 = vmatprep.subr.mxu0 0.0
    %247 = vmatpush2.msra.mxu0 0.0
    %248 = vmatprep.subr.mxu0 0.0
    %249 = vmatpush2.msra.mxu0 0.0
    %250 = vmatprep.subr.mxu0 0.0
    %251 = vmatpush2.msra.mxu0 0.0
    %252 = vmatprep.subr.mxu0 0.0
    %253 = vmatpush2.msra.mxu0 0.0
    %254 = vmatprep.subr.mxu0 0.0
    %255 = vmatpush2.msra.mxu0 0.0
    %256 = vmatprep.subr.mxu0 0.0
    %257 = vmatpush2.msra.mxu0 0.0
    %258 = vmatprep.subr.mxu0 0.0
    %259 = vmatpush2.msra.mxu0 0.0
    %260 = vmatprep.subr.mxu0 0.0
    %261 = vmatpush2.msra.mxu0 0.0
    %262 = vmatprep.subr.mxu0 0.0
    %263 = vmatpush2.msra.mxu0 0.0
    %264 = vmatprep.subr.mxu0 0.0
    %265 = vmatpush2.msra.mxu0 0.0
    %266 = vmatprep.subr.mxu0 0.0
    %267 = vmatpush2.msra.mxu0 0.0
    %268 = vmatprep.mubr.f32.mxu0 0.0
    %269 = vmatmul.mubr.f32.gmra.mxu0 %v202
    %v270 = vpop.f32.mrf.mxu0
    %v271 = vadd.f32 0.0, %v270
    %v272 = vpop.f32.mrf.mxu0
    %273 = vdwg.mxu0
    %v274 = vadd.f32 %v189, %v271
    %v275 = vxor.u32 %v274, 2147483648
    %v276 = vmul.f32 %v275, 1.442695
    %v277 = vpow.pop %v276
    %v278 = vadd.f32 %v277, 1.0
    %v279 = vrcp.pop %v278
    %v280 = vmul.f32 1.0, %v279
    %v281 = vtanh.pop %v274
    %v282 = vmul.f32 %v280, 0.0
    %284 = vrot.lane.b32.xlu0 %v281, 64
    %v285 = vpop.permute.xlu0 %284
    %v287 = vmul.f32 %v280, %v285
    %289 = vrot.lane.b32.xlu0 %v287, 32
    %v290 = vpop.permute.xlu0 %289
    %v292 = vadd.f32 %v282, %v290
    %v293 = vtanh.pop %v292
    %295 = vrot.lane.b32.xlu0 %v293, 64
    %v296 = vpop.permute.xlu0 %295
    %v298 = vmul.f32 %v280, %v296
    %300 = vrot.lane.b32.xlu0 %v298, 32
    %v301 = vpop.permute.xlu0 %300
    %vm303 = vcmask 254976
    %304 = vst.msk [vmem:[#allocation3] sm:$0x3] %vm303, %v301
    %v305 = vsel %vm115, %v301, 0
    %307 = vmatprep.subr.mxu0 0.0
    %308 = vmatpush1.msra.mxu0 0.0
    %309 = vmatprep.subr.mxu0 0.0
    %310 = vmatpush1.msra.mxu0 0.0
    %311 = vmatprep.subr.mxu0 0.0
    %312 = vmatpush1.msra.mxu0 0.0
    %313 = vmatprep.subr.mxu0 0.0
    %314 = vmatpush1.msra.mxu0 0.0
    %315 = vmatprep.subr.mxu0 0.0
    %316 = vmatpush1.msra.mxu0 0.0
    %317 = vmatprep.subr.mxu0 0.0
    %318 = vmatpush1.msra.mxu0 0.0
    %319 = vmatprep.subr.mxu0 0.0
    %320 = vmatpush1.msra.mxu0 0.0
    %321 = vmatprep.subr.mxu0 0.0
    %322 = vmatpush1.msra.mxu0 0.0
    %323 = vmatprep.subr.mxu0 0.0
    %324 = vmatpush1.msra.mxu0 0.0
    %325 = vmatprep.subr.mxu0 0.0
    %326 = vmatpush1.msra.mxu0 0.0
    %327 = vmatprep.subr.mxu0 0.0
    %328 = vmatpush1.msra.mxu0 0.0
    %329 = vmatprep.subr.mxu0 0.0
    %330 = vmatpush1.msra.mxu0 0.0
    %331 = vmatprep.subr.mxu0 0.0
    %332 = vmatpush1.msra.mxu0 %v200
    %333 = vmatprep.subr.mxu0 0.0
    %334 = vmatpush1.msra.mxu0 %v199
    %335 = vmatprep.subr.mxu0 0.0
    %336 = vmatpush1.msra.mxu0 %v198
    %337 = vmatprep.subr.mxu0 0.0
    %338 = vmatpush1.msra.mxu0 %v197
    %339 = vmatprep.subr.mxu0 0.0
    %340 = vmatpush2.msra.mxu0 0.0
    %341 = vmatprep.subr.mxu0 0.0
    %342 = vmatpush2.msra.mxu0 0.0
    %343 = vmatprep.subr.mxu0 0.0
    %344 = vmatpush2.msra.mxu0 0.0
    %345 = vmatprep.subr.mxu0 0.0
    %346 = vmatpush2.msra.mxu0 0.0
    %347 = vmatprep.subr.mxu0 0.0
    %348 = vmatpush2.msra.mxu0 0.0
    %349 = vmatprep.subr.mxu0 0.0
    %350 = vmatpush2.msra.mxu0 0.0
    %351 = vmatprep.subr.mxu0 0.0
    %352 = vmatpush2.msra.mxu0 0.0
    %353 = vmatprep.subr.mxu0 0.0
    %354 = vmatpush2.msra.mxu0 0.0
    %355 = vmatprep.subr.mxu0 0.0
    %356 = vmatpush2.msra.mxu0 0.0
    %357 = vmatprep.subr.mxu0 0.0
    %358 = vmatpush2.msra.mxu0 0.0
    %359 = vmatprep.subr.mxu0 0.0
    %360 = vmatpush2.msra.mxu0 0.0
    %361 = vmatprep.subr.mxu0 0.0
    %362 = vmatpush2.msra.mxu0 0.0
    %363 = vmatprep.subr.mxu0 0.0
    %364 = vmatpush2.msra.mxu0 0.0
    %365 = vmatprep.subr.mxu0 0.0
    %366 = vmatpush2.msra.mxu0 0.0
    %367 = vmatprep.subr.mxu0 0.0
    %368 = vmatpush2.msra.mxu0 0.0
    %369 = vmatprep.subr.mxu0 0.0
    %370 = vmatpush2.msra.mxu0 0.0
    %371 = vmatprep.mubr.f32.mxu0 0.0
    %372 = vmatmul.mubr.f32.gmra.mxu0 %v305
    %v373 = vpop.f32.mrf.mxu0
    %v374 = vadd.f32 0.0, %v373
    %v375 = vpop.f32.mrf.mxu0
    %376 = vdwg.mxu0
    %v378 = vrot.slane %v374, 6
    %v380 = vadd.f32 %v189, %v378
    %v381 = vxor.u32 %v380, 2147483648
    %v382 = vmul.f32 %v381, 1.442695
    %v383 = vpow.pop %v382
    %v384 = vadd.f32 %v383, 1.0
    %v385 = vrcp.pop %v384
    %v386 = vmul.f32 1.0, %v385
    %v387 = vtanh.pop %v380
    %v389 = vrot.slane %v292, 6
    %v391 = vmul.f32 %v386, %v389
    %393 = vrot.lane.b32.xlu0 %v387, 64
    %v394 = vpop.permute.xlu0 %393
    %v396 = vmul.f32 %v386, %v394
    %398 = vrot.lane.b32.xlu0 %v396, 32
    %v399 = vpop.permute.xlu0 %398
    %v401 = vadd.f32 %v391, %v399
    %v402 = vtanh.pop %v401
    %404 = vrot.lane.b32.xlu0 %v402, 64
    %v405 = vpop.permute.xlu0 %404
    %v407 = vmul.f32 %v386, %v405
    %409 = vrot.lane.b32.xlu0 %v407, 32
    %v410 = vpop.permute.xlu0 %409
    %vm412 = vcmask 257026
    %413 = vst.msk [vmem:[#allocation3] sm:$0xc] %vm412, %v410
    %v414 = vrot.slane %v407, 2
    %415 = vrot.lane.b32.xlu0 %v414, 32
    %v416 = vpop.permute.xlu0 %415
    %v417 = vsel %vm115, %v416, 0
    %419 = vmatprep.subr.mxu0 0.0
    %420 = vmatpush1.msra.mxu0 0.0
    %421 = vmatprep.subr.mxu0 0.0
    %422 = vmatpush1.msra.mxu0 0.0
    %423 = vmatprep.subr.mxu0 0.0
    %424 = vmatpush1.msra.mxu0 0.0
    %425 = vmatprep.subr.mxu0 0.0
    %426 = vmatpush1.msra.mxu0 0.0
    %427 = vmatprep.subr.mxu0 0.0
    %428 = vmatpush1.msra.mxu0 0.0
    %429 = vmatprep.subr.mxu0 0.0
    %430 = vmatpush1.msra.mxu0 0.0
    %431 = vmatprep.subr.mxu0 0.0
    %432 = vmatpush1.msra.mxu0 0.0
    %433 = vmatprep.subr.mxu0 0.0
    %434 = vmatpush1.msra.mxu0 0.0
    %435 = vmatprep.subr.mxu0 0.0
    %436 = vmatpush1.msra.mxu0 0.0
    %437 = vmatprep.subr.mxu0 0.0
    %438 = vmatpush1.msra.mxu0 0.0
    %439 = vmatprep.subr.mxu0 0.0
    %440 = vmatpush1.msra.mxu0 0.0
    %441 = vmatprep.subr.mxu0 0.0
    %442 = vmatpush1.msra.mxu0 0.0
    %443 = vmatprep.subr.mxu0 0.0
    %444 = vmatpush1.msra.mxu0 %v200
    %445 = vmatprep.subr.mxu0 0.0
    %446 = vmatpush1.msra.mxu0 %v199
    %447 = vmatprep.subr.mxu0 0.0
    %448 = vmatpush1.msra.mxu0 %v198
    %449 = vmatprep.subr.mxu0 0.0
    %450 = vmatpush1.msra.mxu0 %v197
    %451 = vmatprep.subr.mxu0 0.0
    %452 = vmatpush2.msra.mxu0 0.0
    %453 = vmatprep.subr.mxu0 0.0
    %454 = vmatpush2.msra.mxu0 0.0
    %455 = vmatprep.subr.mxu0 0.0
    %456 = vmatpush2.msra.mxu0 0.0
    %457 = vmatprep.subr.mxu0 0.0
    %458 = vmatpush2.msra.mxu0 0.0
    %459 = vmatprep.subr.mxu0 0.0
    %460 = vmatpush2.msra.mxu0 0.0
    %461 = vmatprep.subr.mxu0 0.0
    %462 = vmatpush2.msra.mxu0 0.0
    %463 = vmatprep.subr.mxu0 0.0
    %464 = vmatpush2.msra.mxu0 0.0
    %465 = vmatprep.subr.mxu0 0.0
    %466 = vmatpush2.msra.mxu0 0.0
    %467 = vmatprep.subr.mxu0 0.0
    %468 = vmatpush2.msra.mxu0 0.0
    %469 = vmatprep.subr.mxu0 0.0
    %470 = vmatpush2.msra.mxu0 0.0
    %471 = vmatprep.subr.mxu0 0.0
    %472 = vmatpush2.msra.mxu0 0.0
    %473 = vmatprep.subr.mxu0 0.0
    %474 = vmatpush2.msra.mxu0 0.0
    %475 = vmatprep.subr.mxu0 0.0
    %476 = vmatpush2.msra.mxu0 0.0
    %477 = vmatprep.subr.mxu0 0.0
    %478 = vmatpush2.msra.mxu0 0.0
    %479 = vmatprep.subr.mxu0 0.0
    %480 = vmatpush2.msra.mxu0 0.0
    %481 = vmatprep.subr.mxu0 0.0
    %482 = vmatpush2.msra.mxu0 0.0
    %483 = vmatprep.mubr.f32.mxu0 0.0
    %484 = vmatmul.mubr.f32.gmra.mxu0 %v417
    %v485 = vpop.f32.mrf.mxu0
    %v486 = vadd.f32 0.0, %v485
    %v487 = vpop.f32.mrf.mxu0
    %488 = vdwg.mxu0
    %v490 = vrot.slane %v486, 4
    %v492 = vadd.f32 %v189, %v490
    %v493 = vxor.u32 %v492, 2147483648
    %v494 = vmul.f32 %v493, 1.442695
    %v495 = vpow.pop %v494
    %v496 = vadd.f32 %v495, 1.0
    %v497 = vrcp.pop %v496
    %v498 = vmul.f32 1.0, %v497
    %v499 = vtanh.pop %v492
    %v501 = vrot.slane %v401, 6
    %v503 = vmul.f32 %v498, %v501
    %505 = vrot.lane.b32.xlu0 %v499, 64
    %v506 = vpop.permute.xlu0 %505
    %v508 = vmul.f32 %v498, %v506
    %510 = vrot.lane.b32.xlu0 %v508, 32
    %v511 = vpop.permute.xlu0 %510
    %v513 = vadd.f32 %v503, %v511
    %v514 = vtanh.pop %v513
    %516 = vrot.lane.b32.xlu0 %v514, 64
    %v517 = vpop.permute.xlu0 %516
    %v519 = vmul.f32 %v498, %v517
    %521 = vrot.lane.b32.xlu0 %v519, 32
    %v522 = vpop.permute.xlu0 %521
    %vm524 = vcmask 259076
    %525 = vst.msk [vmem:[#allocation3] sm:$0x30] %vm524, %v522
    %v526 = vrot.slane %v519, 4
    %527 = vrot.lane.b32.xlu0 %v526, 32
    %v528 = vpop.permute.xlu0 %527
    %v529 = vsel %vm115, %v528, 0
    %531 = vmatprep.subr.mxu0 0.0
    %532 = vmatpush1.msra.mxu0 0.0
    %533 = vmatprep.subr.mxu0 0.0
    %534 = vmatpush1.msra.mxu0 0.0
    %535 = vmatprep.subr.mxu0 0.0
    %536 = vmatpush1.msra.mxu0 0.0
    %537 = vmatprep.subr.mxu0 0.0
    %538 = vmatpush1.msra.mxu0 0.0
    %539 = vmatprep.subr.mxu0 0.0
    %540 = vmatpush1.msra.mxu0 0.0
    %541 = vmatprep.subr.mxu0 0.0
    %542 = vmatpush1.msra.mxu0 0.0
    %543 = vmatprep.subr.mxu0 0.0
    %544 = vmatpush1.msra.mxu0 0.0
    %545 = vmatprep.subr.mxu0 0.0
    %546 = vmatpush1.msra.mxu0 0.0
    %547 = vmatprep.subr.mxu0 0.0
    %548 = vmatpush1.msra.mxu0 0.0
    %549 = vmatprep.subr.mxu0 0.0
    %550 = vmatpush1.msra.mxu0 0.0
    %551 = vmatprep.subr.mxu0 0.0
    %552 = vmatpush1.msra.mxu0 0.0
    %553 = vmatprep.subr.mxu0 0.0
    %554 = vmatpush1.msra.mxu0 0.0
    %555 = vmatprep.subr.mxu0 0.0
    %556 = vmatpush1.msra.mxu0 %v200
    %557 = vmatprep.subr.mxu0 0.0
    %558 = vmatpush1.msra.mxu0 %v199
    %559 = vmatprep.subr.mxu0 0.0
    %560 = vmatpush1.msra.mxu0 %v198
    %561 = vmatprep.subr.mxu0 0.0
    %562 = vmatpush1.msra.mxu0 %v197
    %563 = vmatprep.subr.mxu0 0.0
    %564 = vmatpush2.msra.mxu0 0.0
    %565 = vmatprep.subr.mxu0 0.0
    %566 = vmatpush2.msra.mxu0 0.0
    %567 = vmatprep.subr.mxu0 0.0
    %568 = vmatpush2.msra.mxu0 0.0
    %569 = vmatprep.subr.mxu0 0.0
    %570 = vmatpush2.msra.mxu0 0.0
    %571 = vmatprep.subr.mxu0 0.0
    %572 = vmatpush2.msra.mxu0 0.0
    %573 = vmatprep.subr.mxu0 0.0
    %574 = vmatpush2.msra.mxu0 0.0
    %575 = vmatprep.subr.mxu0 0.0
    %576 = vmatpush2.msra.mxu0 0.0
    %577 = vmatprep.subr.mxu0 0.0
    %578 = vmatpush2.msra.mxu0 0.0
    %579 = vmatprep.subr.mxu0 0.0
    %580 = vmatpush2.msra.mxu0 0.0
    %581 = vmatprep.subr.mxu0 0.0
    %582 = vmatpush2.msra.mxu0 0.0
    %583 = vmatprep.subr.mxu0 0.0
    %584 = vmatpush2.msra.mxu0 0.0
    %585 = vmatprep.subr.mxu0 0.0
    %586 = vmatpush2.msra.mxu0 0.0
    %587 = vmatprep.subr.mxu0 0.0
    %588 = vmatpush2.msra.mxu0 0.0
    %589 = vmatprep.subr.mxu0 0.0
    %590 = vmatpush2.msra.mxu0 0.0
    %591 = vmatprep.subr.mxu0 0.0
    %592 = vmatpush2.msra.mxu0 0.0
    %593 = vmatprep.subr.mxu0 0.0
    %594 = vmatpush2.msra.mxu0 0.0
    %595 = vmatprep.mubr.f32.mxu0 0.0
    %596 = vmatmul.mubr.f32.gmra.mxu0 %v529
    %v597 = vpop.f32.mrf.mxu0
    %v598 = vadd.f32 0.0, %v597
    %v599 = vpop.f32.mrf.mxu0
    %600 = vdwg.mxu0
    %v602 = vrot.slane %v598, 2
    %v604 = vadd.f32 %v189, %v602
    %v605 = vxor.u32 %v604, 2147483648
    %v606 = vmul.f32 %v605, 1.442695
    %v607 = vpow.pop %v606
    %v608 = vadd.f32 %v607, 1.0
    %v609 = vrcp.pop %v608
    %v610 = vmul.f32 1.0, %v609
    %v611 = vtanh.pop %v604
    %v613 = vrot.slane %v513, 6
    %v615 = vmul.f32 %v610, %v613
    %617 = vrot.lane.b32.xlu0 %v611, 64
    %v618 = vpop.permute.xlu0 %617
    %v620 = vmul.f32 %v610, %v618
    %622 = vrot.lane.b32.xlu0 %v620, 32
    %v623 = vpop.permute.xlu0 %622
    %v625 = vadd.f32 %v615, %v623
    %v626 = vtanh.pop %v625
    %628 = vrot.lane.b32.xlu0 %v626, 64
    %v629 = vpop.permute.xlu0 %628
    %v631 = vmul.f32 %v610, %v629
    %633 = vrot.lane.b32.xlu0 %v631, 32
    %v634 = vpop.permute.xlu0 %633
    %vm636 = vcmask 261126
    %637 = vst.msk [vmem:[#allocation3] sm:$0xc0] %vm636, %v634
    %v638 = vrot.slane %v631, 6
    %639 = vrot.lane.b32.xlu0 %v638, 32
    %v640 = vpop.permute.xlu0 %639
    %v641 = vsel %vm115, %v640, 0
    %643 = vmatprep.subr.mxu0 0.0
    %644 = vmatpush1.msra.mxu0 0.0
    %645 = vmatprep.subr.mxu0 0.0
    %646 = vmatpush1.msra.mxu0 0.0
    %647 = vmatprep.subr.mxu0 0.0
    %648 = vmatpush1.msra.mxu0 0.0
    %649 = vmatprep.subr.mxu0 0.0
    %650 = vmatpush1.msra.mxu0 0.0
    %651 = vmatprep.subr.mxu0 0.0
    %652 = vmatpush1.msra.mxu0 0.0
    %653 = vmatprep.subr.mxu0 0.0
    %654 = vmatpush1.msra.mxu0 0.0
    %655 = vmatprep.subr.mxu0 0.0
    %656 = vmatpush1.msra.mxu0 0.0
    %657 = vmatprep.subr.mxu0 0.0
    %658 = vmatpush1.msra.mxu0 0.0
    %659 = vmatprep.subr.mxu0 0.0
    %660 = vmatpush1.msra.mxu0 0.0
    %661 = vmatprep.subr.mxu0 0.0
    %662 = vmatpush1.msra.mxu0 0.0
    %663 = vmatprep.subr.mxu0 0.0
    %664 = vmatpush1.msra.mxu0 0.0
    %665 = vmatprep.subr.mxu0 0.0
    %666 = vmatpush1.msra.mxu0 0.0
    %667 = vmatprep.subr.mxu0 0.0
    %668 = vmatpush1.msra.mxu0 %v200
    %669 = vmatprep.subr.mxu0 0.0
    %670 = vmatpush1.msra.mxu0 %v199
    %671 = vmatprep.subr.mxu0 0.0
    %672 = vmatpush1.msra.mxu0 %v198
    %673 = vmatprep.subr.mxu0 0.0
    %674 = vmatpush1.msra.mxu0 %v197
    %675 = vmatprep.subr.mxu0 0.0
    %676 = vmatpush2.msra.mxu0 0.0
    %677 = vmatprep.subr.mxu0 0.0
    %678 = vmatpush2.msra.mxu0 0.0
    %679 = vmatprep.subr.mxu0 0.0
    %680 = vmatpush2.msra.mxu0 0.0
    %681 = vmatprep.subr.mxu0 0.0
    %682 = vmatpush2.msra.mxu0 0.0
    %683 = vmatprep.subr.mxu0 0.0
    %684 = vmatpush2.msra.mxu0 0.0
    %685 = vmatprep.subr.mxu0 0.0
    %686 = vmatpush2.msra.mxu0 0.0
    %687 = vmatprep.subr.mxu0 0.0
    %688 = vmatpush2.msra.mxu0 0.0
    %689 = vmatprep.subr.mxu0 0.0
    %690 = vmatpush2.msra.mxu0 0.0
    %691 = vmatprep.subr.mxu0 0.0
    %692 = vmatpush2.msra.mxu0 0.0
    %693 = vmatprep.subr.mxu0 0.0
    %694 = vmatpush2.msra.mxu0 0.0
    %695 = vmatprep.subr.mxu0 0.0
    %696 = vmatpush2.msra.mxu0 0.0
    %697 = vmatprep.subr.mxu0 0.0
    %698 = vmatpush2.msra.mxu0 0.0
    %699 = vmatprep.subr.mxu0 0.0
    %700 = vmatpush2.msra.mxu0 0.0
    %701 = vmatprep.subr.mxu0 0.0
    %702 = vmatpush2.msra.mxu0 0.0
    %703 = vmatprep.subr.mxu0 0.0
    %704 = vmatpush2.msra.mxu0 0.0
    %705 = vmatprep.subr.mxu0 0.0
    %706 = vmatpush2.msra.mxu0 0.0
    %707 = vmatprep.mubr.f32.mxu0 0.0
    %708 = vmatmul.mubr.f32.gmra.mxu0 %v641
    %v709 = vpop.f32.mrf.mxu0
    %v710 = vadd.f32 0.0, %v709
    %v711 = vpop.f32.mrf.mxu0
    %712 = vdwg.mxu0
    %v713 = vadd.f32 %v194, %v710
    %v714 = vxor.u32 %v713, 2147483648
    %v715 = vmul.f32 %v714, 1.442695
    %v716 = vpow.pop %v715
    %v717 = vadd.f32 %v716, 1.0
    %v718 = vrcp.pop %v717
    %v719 = vmul.f32 1.0, %v718
    %v720 = vtanh.pop %v713
    %v722 = vrot.slane %v625, 6
    %v724 = vmul.f32 %v719, %v722
    %726 = vrot.lane.b32.xlu0 %v720, 64
    %v727 = vpop.permute.xlu0 %726
    %v729 = vmul.f32 %v719, %v727
    %731 = vrot.lane.b32.xlu0 %v729, 32
    %v732 = vpop.permute.xlu0 %731
    %v734 = vadd.f32 %v724, %v732
    %v735 = vtanh.pop %v734
    %737 = vrot.lane.b32.xlu0 %v735, 64
    %v738 = vpop.permute.xlu0 %737
    %v740 = vmul.f32 %v719, %v738
    %742 = vrot.lane.b32.xlu0 %v740, 32
    %v743 = vpop.permute.xlu0 %742
    %745 = vst.msk [vmem:[#allocation3 + $0x8] sm:$0x3] %vm303, %v743
    %v746 = vsel %vm115, %v743, 0
    %748 = vmatprep.subr.mxu0 0.0
    %749 = vmatpush1.msra.mxu0 0.0
    %750 = vmatprep.subr.mxu0 0.0
    %751 = vmatpush1.msra.mxu0 0.0
    %752 = vmatprep.subr.mxu0 0.0
    %753 = vmatpush1.msra.mxu0 0.0
    %754 = vmatprep.subr.mxu0 0.0
    %755 = vmatpush1.msra.mxu0 0.0
    %756 = vmatprep.subr.mxu0 0.0
    %757 = vmatpush1.msra.mxu0 0.0
    %758 = vmatprep.subr.mxu0 0.0
    %759 = vmatpush1.msra.mxu0 0.0
    %760 = vmatprep.subr.mxu0 0.0
    %761 = vmatpush1.msra.mxu0 0.0
    %762 = vmatprep.subr.mxu0 0.0
    %763 = vmatpush1.msra.mxu0 0.0
    %764 = vmatprep.subr.mxu0 0.0
    %765 = vmatpush1.msra.mxu0 0.0
    %766 = vmatprep.subr.mxu0 0.0
    %767 = vmatpush1.msra.mxu0 0.0
    %768 = vmatprep.subr.mxu0 0.0
    %769 = vmatpush1.msra.mxu0 0.0
    %770 = vmatprep.subr.mxu0 0.0
    %771 = vmatpush1.msra.mxu0 0.0
    %772 = vmatprep.subr.mxu0 0.0
    %773 = vmatpush1.msra.mxu0 %v200
    %774 = vmatprep.subr.mxu0 0.0
    %775 = vmatpush1.msra.mxu0 %v199
    %776 = vmatprep.subr.mxu0 0.0
    %777 = vmatpush1.msra.mxu0 %v198
    %778 = vmatprep.subr.mxu0 0.0
    %779 = vmatpush1.msra.mxu0 %v197
    %780 = vmatprep.subr.mxu0 0.0
    %781 = vmatpush2.msra.mxu0 0.0
    %782 = vmatprep.subr.mxu0 0.0
    %783 = vmatpush2.msra.mxu0 0.0
    %784 = vmatprep.subr.mxu0 0.0
    %785 = vmatpush2.msra.mxu0 0.0
    %786 = vmatprep.subr.mxu0 0.0
    %787 = vmatpush2.msra.mxu0 0.0
    %788 = vmatprep.subr.mxu0 0.0
    %789 = vmatpush2.msra.mxu0 0.0
    %790 = vmatprep.subr.mxu0 0.0
    %791 = vmatpush2.msra.mxu0 0.0
    %792 = vmatprep.subr.mxu0 0.0
    %793 = vmatpush2.msra.mxu0 0.0
    %794 = vmatprep.subr.mxu0 0.0
    %795 = vmatpush2.msra.mxu0 0.0
    %796 = vmatprep.subr.mxu0 0.0
    %797 = vmatpush2.msra.mxu0 0.0
    %798 = vmatprep.subr.mxu0 0.0
    %799 = vmatpush2.msra.mxu0 0.0
    %800 = vmatprep.subr.mxu0 0.0
    %801 = vmatpush2.msra.mxu0 0.0
    %802 = vmatprep.subr.mxu0 0.0
    %803 = vmatpush2.msra.mxu0 0.0
    %804 = vmatprep.subr.mxu0 0.0
    %805 = vmatpush2.msra.mxu0 0.0
    %806 = vmatprep.subr.mxu0 0.0
    %807 = vmatpush2.msra.mxu0 0.0
    %808 = vmatprep.subr.mxu0 0.0
    %809 = vmatpush2.msra.mxu0 0.0
    %810 = vmatprep.subr.mxu0 0.0
    %811 = vmatpush2.msra.mxu0 0.0
    %812 = vmatprep.mubr.f32.mxu0 0.0
    %813 = vmatmul.mubr.f32.gmra.mxu0 %v746
    %v814 = vpop.f32.mrf.mxu0
    %v815 = vadd.f32 0.0, %v814
    %v816 = vpop.f32.mrf.mxu0
    %817 = vdwg.mxu0
    %v819 = vrot.slane %v815, 6
    %v821 = vadd.f32 %v194, %v819
    %v822 = vxor.u32 %v821, 2147483648
    %v823 = vmul.f32 %v822, 1.442695
    %v824 = vpow.pop %v823
    %v825 = vadd.f32 %v824, 1.0
    %v826 = vrcp.pop %v825
    %v827 = vmul.f32 1.0, %v826
    %v828 = vtanh.pop %v821
    %v830 = vrot.slane %v734, 6
    %v832 = vmul.f32 %v827, %v830
    %834 = vrot.lane.b32.xlu0 %v828, 64
    %v835 = vpop.permute.xlu0 %834
    %v837 = vmul.f32 %v827, %v835
    %839 = vrot.lane.b32.xlu0 %v837, 32
    %v840 = vpop.permute.xlu0 %839
    %v842 = vadd.f32 %v832, %v840
    %v843 = vtanh.pop %v842
    %845 = vrot.lane.b32.xlu0 %v843, 64
    %v846 = vpop.permute.xlu0 %845
    %v848 = vmul.f32 %v827, %v846
    %850 = vrot.lane.b32.xlu0 %v848, 32
    %v851 = vpop.permute.xlu0 %850
    %853 = vst.msk [vmem:[#allocation3 + $0x8] sm:$0xc] %vm412, %v851
    %v854 = vrot.slane %v848, 2
    %855 = vrot.lane.b32.xlu0 %v854, 32
    %v856 = vpop.permute.xlu0 %855
    %v857 = vsel %vm115, %v856, 0
    %859 = vmatprep.subr.mxu0 0.0
    %860 = vmatpush1.msra.mxu0 0.0
    %861 = vmatprep.subr.mxu0 0.0
    %862 = vmatpush1.msra.mxu0 0.0
    %863 = vmatprep.subr.mxu0 0.0
    %864 = vmatpush1.msra.mxu0 0.0
    %865 = vmatprep.subr.mxu0 0.0
    %866 = vmatpush1.msra.mxu0 0.0
    %867 = vmatprep.subr.mxu0 0.0
    %868 = vmatpush1.msra.mxu0 0.0
    %869 = vmatprep.subr.mxu0 0.0
    %870 = vmatpush1.msra.mxu0 0.0
    %871 = vmatprep.subr.mxu0 0.0
    %872 = vmatpush1.msra.mxu0 0.0
    %873 = vmatprep.subr.mxu0 0.0
    %874 = vmatpush1.msra.mxu0 0.0
    %875 = vmatprep.subr.mxu0 0.0
    %876 = vmatpush1.msra.mxu0 0.0
    %877 = vmatprep.subr.mxu0 0.0
    %878 = vmatpush1.msra.mxu0 0.0
    %879 = vmatprep.subr.mxu0 0.0
    %880 = vmatpush1.msra.mxu0 0.0
    %881 = vmatprep.subr.mxu0 0.0
    %882 = vmatpush1.msra.mxu0 0.0
    %883 = vmatprep.subr.mxu0 0.0
    %884 = vmatpush1.msra.mxu0 %v200
    %885 = vmatprep.subr.mxu0 0.0
    %886 = vmatpush1.msra.mxu0 %v199
    %887 = vmatprep.subr.mxu0 0.0
    %888 = vmatpush1.msra.mxu0 %v198
    %889 = vmatprep.subr.mxu0 0.0
    %890 = vmatpush1.msra.mxu0 %v197
    %891 = vmatprep.subr.mxu0 0.0
    %892 = vmatpush2.msra.mxu0 0.0
    %893 = vmatprep.subr.mxu0 0.0
    %894 = vmatpush2.msra.mxu0 0.0
    %895 = vmatprep.subr.mxu0 0.0
    %896 = vmatpush2.msra.mxu0 0.0
    %897 = vmatprep.subr.mxu0 0.0
    %898 = vmatpush2.msra.mxu0 0.0
    %899 = vmatprep.subr.mxu0 0.0
    %900 = vmatpush2.msra.mxu0 0.0
    %901 = vmatprep.subr.mxu0 0.0
    %902 = vmatpush2.msra.mxu0 0.0
    %903 = vmatprep.subr.mxu0 0.0
    %904 = vmatpush2.msra.mxu0 0.0
    %905 = vmatprep.subr.mxu0 0.0
    %906 = vmatpush2.msra.mxu0 0.0
    %907 = vmatprep.subr.mxu0 0.0
    %908 = vmatpush2.msra.mxu0 0.0
    %909 = vmatprep.subr.mxu0 0.0
    %910 = vmatpush2.msra.mxu0 0.0
    %911 = vmatprep.subr.mxu0 0.0
    %912 = vmatpush2.msra.mxu0 0.0
    %913 = vmatprep.subr.mxu0 0.0
    %914 = vmatpush2.msra.mxu0 0.0
    %915 = vmatprep.subr.mxu0 0.0
    %916 = vmatpush2.msra.mxu0 0.0
    %917 = vmatprep.subr.mxu0 0.0
    %918 = vmatpush2.msra.mxu0 0.0
    %919 = vmatprep.subr.mxu0 0.0
    %920 = vmatpush2.msra.mxu0 0.0
    %921 = vmatprep.subr.mxu0 0.0
    %922 = vmatpush2.msra.mxu0 0.0
    %923 = vmatprep.mubr.f32.mxu0 0.0
    %924 = vmatmul.mubr.f32.gmra.mxu0 %v857
    %v925 = vpop.f32.mrf.mxu0
    %v926 = vadd.f32 0.0, %v925
    %v927 = vpop.f32.mrf.mxu0
    %928 = vdwg.mxu0
    %v930 = vrot.slane %v926, 4
    %v932 = vadd.f32 %v194, %v930
    %v933 = vxor.u32 %v932, 2147483648
    %v934 = vmul.f32 %v933, 1.442695
    %v935 = vpow.pop %v934
    %v936 = vadd.f32 %v935, 1.0
    %v937 = vrcp.pop %v936
    %v938 = vmul.f32 1.0, %v937
    %v939 = vtanh.pop %v932
    %v941 = vrot.slane %v842, 6
    %v943 = vmul.f32 %v938, %v941
    %945 = vrot.lane.b32.xlu0 %v939, 64
    %v946 = vpop.permute.xlu0 %945
    %v948 = vmul.f32 %v938, %v946
    %950 = vrot.lane.b32.xlu0 %v948, 32
    %v951 = vpop.permute.xlu0 %950
    %v953 = vadd.f32 %v943, %v951
    %v954 = vtanh.pop %v953
    %956 = vrot.lane.b32.xlu0 %v954, 64
    %v957 = vpop.permute.xlu0 %956
    %v959 = vmul.f32 %v938, %v957
    %961 = vrot.lane.b32.xlu0 %v959, 32
    %v962 = vpop.permute.xlu0 %961
    %964 = vst.msk [vmem:[#allocation3 + $0x8] sm:$0x30] %vm524, %v962
    %v965 = vrot.slane %v959, 4
    %966 = vrot.lane.b32.xlu0 %v965, 32
    %v967 = vpop.permute.xlu0 %966
    %v968 = vsel %vm115, %v967, 0
    %970 = vmatprep.subr.mxu0 0.0
    %971 = vmatpush1.msra.mxu0 0.0
    %972 = vmatprep.subr.mxu0 0.0
    %973 = vmatpush1.msra.mxu0 0.0
    %974 = vmatprep.subr.mxu0 0.0
    %975 = vmatpush1.msra.mxu0 0.0
    %976 = vmatprep.subr.mxu0 0.0
    %977 = vmatpush1.msra.mxu0 0.0
    %978 = vmatprep.subr.mxu0 0.0
    %979 = vmatpush1.msra.mxu0 0.0
    %980 = vmatprep.subr.mxu0 0.0
    %981 = vmatpush1.msra.mxu0 0.0
    %982 = vmatprep.subr.mxu0 0.0
    %983 = vmatpush1.msra.mxu0 0.0
    %984 = vmatprep.subr.mxu0 0.0
    %985 = vmatpush1.msra.mxu0 0.0
    %986 = vmatprep.subr.mxu0 0.0
    %987 = vmatpush1.msra.mxu0 0.0
    %988 = vmatprep.subr.mxu0 0.0
    %989 = vmatpush1.msra.mxu0 0.0
    %990 = vmatprep.subr.mxu0 0.0
    %991 = vmatpush1.msra.mxu0 0.0
    %992 = vmatprep.subr.mxu0 0.0
    %993 = vmatpush1.msra.mxu0 0.0
    %994 = vmatprep.subr.mxu0 0.0
    %995 = vmatpush1.msra.mxu0 %v200
    %996 = vmatprep.subr.mxu0 0.0
    %997 = vmatpush1.msra.mxu0 %v199
    %998 = vmatprep.subr.mxu0 0.0
    %999 = vmatpush1.msra.mxu0 %v198
    %1000 = vmatprep.subr.mxu0 0.0
    %1001 = vmatpush1.msra.mxu0 %v197
    %1002 = vmatprep.subr.mxu0 0.0
    %1003 = vmatpush2.msra.mxu0 0.0
    %1004 = vmatprep.subr.mxu0 0.0
    %1005 = vmatpush2.msra.mxu0 0.0
    %1006 = vmatprep.subr.mxu0 0.0
    %1007 = vmatpush2.msra.mxu0 0.0
    %1008 = vmatprep.subr.mxu0 0.0
    %1009 = vmatpush2.msra.mxu0 0.0
    %1010 = vmatprep.subr.mxu0 0.0
    %1011 = vmatpush2.msra.mxu0 0.0
    %1012 = vmatprep.subr.mxu0 0.0
    %1013 = vmatpush2.msra.mxu0 0.0
    %1014 = vmatprep.subr.mxu0 0.0
    %1015 = vmatpush2.msra.mxu0 0.0
    %1016 = vmatprep.subr.mxu0 0.0
    %1017 = vmatpush2.msra.mxu0 0.0
    %1018 = vmatprep.subr.mxu0 0.0
    %1019 = vmatpush2.msra.mxu0 0.0
    %1020 = vmatprep.subr.mxu0 0.0
    %1021 = vmatpush2.msra.mxu0 0.0
    %1022 = vmatprep.subr.mxu0 0.0
    %1023 = vmatpush2.msra.mxu0 0.0
    %1024 = vmatprep.subr.mxu0 0.0
    %1025 = vmatpush2.msra.mxu0 0.0
    %1026 = vmatprep.subr.mxu0 0.0
    %1027 = vmatpush2.msra.mxu0 0.0
    %1028 = vmatprep.subr.mxu0 0.0
    %1029 = vmatpush2.msra.mxu0 0.0
    %1030 = vmatprep.subr.mxu0 0.0
    %1031 = vmatpush2.msra.mxu0 0.0
    %1032 = vmatprep.subr.mxu0 0.0
    %1033 = vmatpush2.msra.mxu0 0.0
    %1034 = vmatprep.mubr.f32.mxu0 0.0
    %1035 = vmatmul.mubr.f32.gmra.mxu0 %v968
    %v1036 = vpop.f32.mrf.mxu0
    %v1037 = vadd.f32 0.0, %v1036
    %v1038 = vpop.f32.mrf.mxu0
    %1039 = vdwg.mxu0
    %v1041 = vrot.slane %v1037, 2
    %v1043 = vadd.f32 %v194, %v1041
    %v1044 = vxor.u32 %v1043, 2147483648
    %v1045 = vmul.f32 %v1044, 1.442695
    %v1046 = vpow.pop %v1045
    %v1047 = vadd.f32 %v1046, 1.0
    %v1048 = vrcp.pop %v1047
    %v1049 = vmul.f32 1.0, %v1048
    %v1050 = vtanh.pop %v1043
    %v1052 = vrot.slane %v953, 6
    %v1054 = vmul.f32 %v1049, %v1052
    %1056 = vrot.lane.b32.xlu0 %v1050, 64
    %v1057 = vpop.permute.xlu0 %1056
    %v1059 = vmul.f32 %v1049, %v1057
    %1061 = vrot.lane.b32.xlu0 %v1059, 32
    %v1062 = vpop.permute.xlu0 %1061
    %v1064 = vadd.f32 %v1054, %v1062
    %v1065 = vtanh.pop %v1064
    %1067 = vrot.lane.b32.xlu0 %v1065, 64
    %v1068 = vpop.permute.xlu0 %1067
    %v1070 = vmul.f32 %v1049, %v1068
    %1072 = vrot.lane.b32.xlu0 %v1070, 32
    %v1073 = vpop.permute.xlu0 %1072
    %1075 = vst.msk [vmem:[#allocation3 + $0x8] sm:$0xc0] %vm636, %v1073
    %v1076 = vld [vmem:[#allocation3] sm:$0xff]
    %v1077 = vld [vmem:[#allocation3 + $0x8] sm:$0xff]
    %v1078 = vsel %vm115, %v1076, 0.0
    %v1079 = vsel %vm115, %v1077, 0.0
    %v1080 = vadd.f32 %v1078, %v1079
    %v1081 = vrot.slane %v1080, 4
    %v1082 = vadd.f32 %v1080, %v1081
    %v1083 = vrot.slane %v1082, 2
    %v1084 = vadd.f32 %v1082, %v1083
    %v1085 = vrot.slane %v1084, 1
    %v1086 = vadd.f32 %v1084, %v1085
    %v1087 = vrcp.pop 16.0
    %v1088 = vmul.f32 %v1086, %v1087
    %v1089 = vsub.f32 %v1076, %v1088
    %v1090 = vsub.f32 %v1077, %v1088
    %v1091 = vmul.f32 %v1089, %v1089
    %v1092 = vmul.f32 %v1090, %v1090
    %v1093 = vsel %vm115, %v1091, 0.0
    %v1094 = vsel %vm115, %v1092, 0.0
    %v1095 = vadd.f32 %v1093, %v1094
    %v1096 = vrot.slane %v1095, 4
    %v1097 = vadd.f32 %v1095, %v1096
    %v1098 = vrot.slane %v1097, 2
    %v1099 = vadd.f32 %v1097, %v1098
    %v1100 = vrot.slane %v1099, 1
    %v1101 = vadd.f32 %v1099, %v1100
    %v1102 = vmul.f32 %v1101, %v1087
    %v1103 = vadd.f32 %v1102, 1e-05
    %v1104 = vrsqrt.pop %v1103
    %v1105 = vmul.f32 %v1089, %v1104
    %v1106 = vmul.f32 %v1090, %v1104
    %v1107 = vld [vmem:[%s5] sm:$0x1]
    %v1109 = vlaneseq
    %v1110 = vshrl.u32 %v1109, 7
    %v1111 = vsub.s32 0, %v1110
    %v1112 = vrot.slane %v1107, %v1111
    %v1114 = vmul.f32 %v1105, %v1112
    %v1115 = vmul.f32 %v1106, %v1112
    %v1116 = vld [vmem:[%s6] sm:$0x1]
    %v1118 = vlaneseq
    %v1119 = vshrl.u32 %v1118, 7
    %v1120 = vsub.s32 0, %v1119
    %v1121 = vrot.slane %v1116, %v1120
    %v1123 = vadd.f32 %v1114, %v1121
    %v1124 = vadd.f32 %v1115, %v1121
    %v1125 = vld [vmem:[%s7] sm:$0xff]
    %v1126 = vld [vmem:[%s7 + $0x8] sm:$0xff]
    %v1127 = vld [vmem:[%s7 + $0x10] sm:$0xff]
    %v1128 = vld [vmem:[%s7 + $0x18] sm:$0xff]
    %v1129 = vld [vmem:[%s8] sm:$0x1]
    %v1131 = vlaneseq
    %v1132 = vshrl.u32 %v1131, 7
    %v1133 = vsub.s32 0, %v1132
    %v1134 = vrot.slane %v1129, %v1133
    %v1137 = vsel %vm115, %v1123, 0
    %v1140 = vsel %vm115, %v1124, 0
    %1142 = vmatprep.subr.mxu0 0.0
    %1143 = vmatpush1.msra.mxu0 0.0
    %1144 = vmatprep.subr.mxu0 0.0
    %1145 = vmatpush1.msra.mxu0 0.0
    %1146 = vmatprep.subr.mxu0 0.0
    %1147 = vmatpush1.msra.mxu0 0.0
    %1148 = vmatprep.subr.mxu0 0.0
    %1149 = vmatpush1.msra.mxu0 0.0
    %1150 = vmatprep.subr.mxu0 0.0
    %1151 = vmatpush1.msra.mxu0 0.0
    %1152 = vmatprep.subr.mxu0 0.0
    %1153 = vmatpush1.msra.mxu0 0.0
    %1154 = vmatprep.subr.mxu0 0.0
    %1155 = vmatpush1.msra.mxu0 0.0
    %1156 = vmatprep.subr.mxu0 0.0
    %1157 = vmatpush1.msra.mxu0 0.0
    %1158 = vmatprep.subr.mxu0 0.0
    %1159 = vmatpush1.msra.mxu0 0.0
    %1160 = vmatprep.subr.mxu0 0.0
    %1161 = vmatpush1.msra.mxu0 0.0
    %1162 = vmatprep.subr.mxu0 0.0
    %1163 = vmatpush1.msra.mxu0 0.0
    %1164 = vmatprep.subr.mxu0 0.0
    %1165 = vmatpush1.msra.mxu0 0.0
    %1166 = vmatprep.subr.mxu0 0.0
    %1167 = vmatpush1.msra.mxu0 %v1128
    %1168 = vmatprep.subr.mxu0 0.0
    %1169 = vmatpush1.msra.mxu0 %v1127
    %1170 = vmatprep.subr.mxu0 0.0
    %1171 = vmatpush1.msra.mxu0 %v1126
    %1172 = vmatprep.subr.mxu0 0.0
    %1173 = vmatpush1.msra.mxu0 %v1125
    %1174 = vmatprep.subr.mxu0 0.0
    %1175 = vmatpush2.msra.mxu0 0.0
    %1176 = vmatprep.subr.mxu0 0.0
    %1177 = vmatpush2.msra.mxu0 0.0
    %1178 = vmatprep.subr.mxu0 0.0
    %1179 = vmatpush2.msra.mxu0 0.0
    %1180 = vmatprep.subr.mxu0 0.0
    %1181 = vmatpush2.msra.mxu0 0.0
    %1182 = vmatprep.subr.mxu0 0.0
    %1183 = vmatpush2.msra.mxu0 0.0
    %1184 = vmatprep.subr.mxu0 0.0
    %1185 = vmatpush2.msra.mxu0 0.0
    %1186 = vmatprep.subr.mxu0 0.0
    %1187 = vmatpush2.msra.mxu0 0.0
    %1188 = vmatprep.subr.mxu0 0.0
    %1189 = vmatpush2.msra.mxu0 0.0
    %1190 = vmatprep.subr.mxu0 0.0
    %1191 = vmatpush2.msra.mxu0 0.0
    %1192 = vmatprep.subr.mxu0 0.0
    %1193 = vmatpush2.msra.mxu0 0.0
    %1194 = vmatprep.subr.mxu0 0.0
    %1195 = vmatpush2.msra.mxu0 0.0
    %1196 = vmatprep.subr.mxu0 0.0
    %1197 = vmatpush2.msra.mxu0 0.0
    %1198 = vmatprep.subr.mxu0 0.0
    %1199 = vmatpush2.msra.mxu0 0.0
    %1200 = vmatprep.subr.mxu0 0.0
    %1201 = vmatpush2.msra.mxu0 0.0
    %1202 = vmatprep.subr.mxu0 0.0
    %1203 = vmatpush2.msra.mxu0 0.0
    %1204 = vmatprep.subr.mxu0 0.0
    %1205 = vmatpush2.msra.mxu0 0.0
    %1206 = vmatprep.mubr.f32.mxu0 0.0
    %1207 = vmatmul.mubr.f32.gmra.mxu0 %v1137
    %v1208 = vpop.f32.mrf.mxu0
    %v1209 = vadd.f32 %v1134, %v1208
    %v1210 = vpop.f32.mrf.mxu0
    %1211 = vmatprep.mubr.f32.mxu0 0.0
    %1212 = vmatmul.mubr.f32.gmra.mxu0 %v1140
    %v1213 = vpop.f32.mrf.mxu0
    %v1214 = vadd.f32 %v1134, %v1213
    %v1215 = vpop.f32.mrf.mxu0
    %1216 = vdwg.mxu0
    %1217 = vst [vmem:[#allocation6] sm:$0xff] %v1209
    %1218 = vst [vmem:[#allocation6 + $0x8] sm:$0xff] %v1214
    // Predicated region
    $region34: #{tpu_custom_call.1} parent=1 // pred_check
      _
    $region35: #{tpu_custom_call.1} parent=1 // pred_check_branch
      %1220 = sbr.rel (0) target = $region37
    $region36: #{tpu_custom_call.1} parent=1 // pred_region
      %s1222 = ssub.s32 256, 256
      %1223 = vsyncadd [#allocation7], %s1222
      %s1224 = sshll.u32 [#allocation6], 4
      %s1225 = int_to_ptr.vmem [resolvable:$true] %s1224
      %1230 = dma.vmem_to_hbm [thread:$0]  %s1225, 256, %s9, [#allocation7], 128, 128, 8
    $region37: #{tpu_custom_call.1} parent=1 // pred_fallthru
      _
    // Predicated region
    $region38: #{tpu_custom_call.1} parent=1 // pred_check
      _
    $region39: #{tpu_custom_call.1} parent=1 // pred_check_branch
      %1232 = sbr.rel (0) target = $region41
    $region40: #{tpu_custom_call.1} parent=1 // pred_region
      %1233 = dma.done [#allocation7], 256
    $region41: #{tpu_custom_call.1} parent=1 // pred_fallthru
      _
    %1234 = vsyncpa [#allocation7], 1

</llo_original>
